<compile_context>
chip_gen: v5e
topology: v5e:2x2
jax: 0.10.0
libtpu: 0.0.40
codegen_flags: <defaults>
</compile_context>

<pallas_src>
import functools

import jax
import jax.numpy as jnp
from jax.experimental import pallas as pl
from jax.experimental.pallas import tpu as pltpu


def _round_up(x, m):
    return ((x + m - 1) // m) * m


def _vmem_capacity_bytes():
    """Physical VMEM of the attached TPU (fallback: 64 MiB, the v7x size)."""
    try:
        info = pltpu.get_tpu_info()
        cap = getattr(info, "vmem_capacity_bytes", None)
        if cap:
            return int(cap)
    except Exception:
        pass
    return 64 * 1024 * 1024


def answer_point_kernel(cq_ref, p_ref, mask_ref, ws_ref, we_ref,
                        sprob_ref, eprob_ref, slog_ref, elog_ref,
                        *, precision):
    cq = cq_ref[...]                                    # (TB, Q)     f32
    p = p_ref[...]                                      # (TB, N, C)  f32 / bf16
    mask = mask_ref[...]                                # (TB, N)     f32

    # Tiny per-head projections of the question vector (MXU):
    #   v_h[b, c] = sum_q cq[b, q] * W_h[q, c]
    vs = jnp.dot(cq, ws_ref[...], precision=precision,
                 preferred_element_type=jnp.float32)    # (TB, C)
    ve = jnp.dot(cq, we_ref[...], precision=precision,
                 preferred_element_type=jnp.float32)    # (TB, C)
    v2 = jnp.stack([vs, ve], axis=1)                    # (TB, 2, C)
    if v2.dtype != p.dtype:
        v2 = v2.astype(p.dtype)                         # match MXU operand dtypes

    # Single pass over p for BOTH heads: batched MXU contraction over C
    # (the flash-attention 'bqd,bkd->bqk' pattern).  Output is lane-dense over
    # N and accumulated in f32 -- no full-tile cast / broadcast / XLU reduce.
    logits = jnp.einsum("bhc,bnc->bhn", v2, p,
                        precision=precision,
                        preferred_element_type=jnp.float32)   # (TB, 2, N)

    # Additive mask, exactly as the PyTorch module (broadcast over the 2 heads).
    exp_mask = (1.0 - mask)[:, None, :] * jnp.float32(-1e30)  # (TB, 1, N)
    masked = logits + exp_mask                                 # (TB, 2, N)

    # Stable softmax over the context axis (lanes); exp runs on the EUP.
    m = jnp.max(masked, axis=-1, keepdims=True)
    ex = jnp.exp(masked - m)
    denom = jnp.sum(ex, axis=-1, keepdims=True)
    prob = ex * pl.reciprocal(denom, approx=False)

    slog_ref[...] = masked[:, 0, :]
    elog_ref[...] = masked[:, 1, :]
    sprob_ref[...] = prob[:, 0, :]
    eprob_ref[...] = prob[:, 1, :]


def _tile_bytes(tb, n, c, q, p_itemsize):
    p_blk = tb * n * c * p_itemsize                      # streamed p block
    io_blk = tb * q * 4 + 5 * tb * n * 4                 # cq + mask + 4 outputs
    w_blk = 2 * q * c * 4                                # the two weight blocks
    dbuf = 2 * (p_blk + io_blk + w_blk)                  # Pallas double-buffers blocks
    # In-kernel f32 temporaries: (tb,2,N) logits/masked/exp/prob (head dim padded
    # to 8 sublanes), (tb,2,C) v2, plus small per-head slices.
    inter = (4 * tb * 8 * _round_up(n, 128) * 4
             + tb * 8 * _round_up(c, 128) * 4
             + 8 * tb * n * 4)
    return dbuf + inter


def answer_point(c_q, p, p_mask, w_start, w_end, *,
                 precision=jax.lax.Precision.HIGHEST):
    """c_q: (B, Q), p: (B, N, C), p_mask: (B, N); w_*: (Q, C) (PyTorch Linear weight)."""
    B, Q = c_q.shape
    b2, N, C = p.shape
    assert b2 == B and p_mask.shape == (B, N)
    assert w_start.shape == (Q, C) and w_end.shape == (Q, C)

    # Small operands are kept in f32.  p is streamed in the dtype it arrives in
    # (f32 or bf16): no wrapper-side cast / pad pass over the dominant tensor.
    if p.dtype not in (jnp.float32, jnp.bfloat16):
        p = p.astype(jnp.float32)
    c_q = c_q.astype(jnp.float32)
    p_mask = p_mask.astype(jnp.float32)
    w_start = w_start.astype(jnp.float32)
    w_end = w_end.astype(jnp.float32)

    p_itemsize = jnp.dtype(p.dtype).itemsize
    vmem_cap = _vmem_capacity_bytes()
    budget = int(vmem_cap * 0.70)                        # per-generation sizing

    if _tile_bytes(8, N, C, Q, p_itemsize) > int(vmem_cap * 0.9):
        # A C-reduction grid axis (logits accumulated in VMEM scratch, softmax in
        # a pl.when epilogue) would be needed at such sizes; realistic SQuAD
        # shapes fit comfortably, so refuse instead of overflowing VMEM.
        raise ValueError(
            f"AnswerPoint tile (8, {N}, {C}) does not fit in VMEM "
            f"({vmem_cap // 2**20} MiB); N*C is too large for this kernel.")

    # Largest batch tile (multiple of 8, dividing the 8-padded batch so padding
    # of p is minimal) that fits the per-generation VMEM budget.
    b_ceil = _round_up(B, 8)
    candidates = [t for t in range(8, min(b_ceil, 512) + 1, 8)
                  if b_ceil % t == 0
                  and _tile_bytes(t, N, C, Q, p_itemsize) <= budget]
    if not candidates:
        candidates = [8]
    tb = candidates[-1]
    # Keep >= 2 grid steps so both v7x TensorCores get work via the "parallel"
    # batch axis; costs one ~0.35us step on single-TC v5e/v6e (negligible).
    while len(candidates) > 1 and b_ceil // tb < 2:
        candidates.pop()
        tb = candidates[-1]

    Bp = b_ceil
    pad_b = Bp - B
    if pad_b:
        # Only hit when B is not a multiple of 8; pads at most 7 rows.
        c_q = jnp.pad(c_q, ((0, pad_b), (0, 0)))
        p_mask = jnp.pad(p_mask, ((0, pad_b), (0, 0)))
        p = jnp.pad(p, ((0, pad_b), (0, 0), (0, 0)))

    grid = (Bp // tb,)
    row_spec = pl.BlockSpec((tb, N), lambda i: (i, 0))
    vmem_limit = int(min(
        max(_tile_bytes(tb, N, C, Q, p_itemsize) + (16 << 20), 32 << 20),
        int(vmem_cap * 0.9)))

    outs = pl.pallas_call(
        functools.partial(answer_point_kernel, precision=precision),
        grid=grid,
        in_specs=[
            pl.BlockSpec((tb, Q), lambda i: (i, 0)),          # c_q rows
            pl.BlockSpec((tb, N, C), lambda i: (i, 0, 0)),    # p rows (unpadded N, C)
            row_spec,                                         # mask rows
            pl.BlockSpec((Q, C), lambda i: (0, 0)),           # W_start (resident)
            pl.BlockSpec((Q, C), lambda i: (0, 0)),           # W_end   (resident)
        ],
        out_specs=tuple(row_spec for _ in range(4)),
        out_shape=tuple(jax.ShapeDtypeStruct((Bp, N), jnp.float32)
                        for _ in range(4)),
        compiler_params=pltpu.CompilerParams(
            dimension_semantics=("parallel",),
            vmem_limit_bytes=vmem_limit,
        ),
    )(c_q, p, p_mask, w_start, w_end)

    sprob, eprob, slog, elog = outs
    if pad_b:
        return (sprob[:B], eprob[:B], slog[:B], elog[:B])
    return (sprob, eprob, slog, elog)


def _reference(c_q, p, p_mask, w_start, w_end):
    # Pure-JAX reference mirroring the PyTorch forward (same f32 precision).
    hp = jax.lax.Precision.HIGHEST
    start_logits = jnp.einsum("bnc,qc,bq->bn", p, w_start, c_q, precision=hp)
    end_logits = jnp.einsum("bnc,qc,bq->bn", p, w_end, c_q, precision=hp)
    exp_mask = (1.0 - p_mask) * (-1e30)
    s_masked = start_logits + exp_mask
    e_masked = end_logits + exp_mask
    return (jax.nn.softmax(s_masked, axis=1),
            jax.nn.softmax(e_masked, axis=1),
            s_masked, e_masked)


if __name__ == "__main__":
    key = jax.random.PRNGKey(0)
    B, Q, C, N = 16, 32, 32, 16   # batch, ques_vec_size, context_vec_size, n+1
    k1, k2, k3, k4 = jax.random.split(key, 4)

    c_q = jax.random.normal(k1, (B, Q), dtype=jnp.float32)
    p = jax.random.normal(k2, (B, N, C), dtype=jnp.float32)
    lens = 1 + (jnp.arange(B) % N)                       # valid lengths 1..N
    p_mask = (jnp.arange(N)[None, :] < lens[:, None]).astype(jnp.float32)

    # xavier_normal_ for nn.Linear weights of shape (Q, C)
    std = (2.0 / (Q + C)) ** 0.5
    w_start = std * jax.random.normal(k3, (Q, C), dtype=jnp.float32)
    w_end = std * jax.random.normal(k4, (Q, C), dtype=jnp.float32)

    outs = answer_point(c_q, p, p_mask, w_start, w_end)
    outs = jax.block_until_ready(outs)
    sprob, eprob, slog, elog = outs

    r_sp, r_ep, r_sl, r_el = _reference(c_q, p, p_mask, w_start, w_end)
    assert sprob.shape == (B, N) and eprob.shape == (B, N)
    assert slog.shape == (B, N) and elog.shape == (B, N)
    assert jnp.allclose(sprob, r_sp, rtol=1e-5, atol=1e-5)
    assert jnp.allclose(eprob, r_ep, rtol=1e-5, atol=1e-5)
    assert jnp.allclose(slog, r_sl, rtol=1e-5, atol=1e-5)
    assert jnp.allclose(elog, r_el, rtol=1e-5, atol=1e-5)
    assert jnp.allclose(jnp.sum(sprob, axis=1), 1.0, atol=1e-5)
    assert jnp.allclose(jnp.sum(eprob, axis=1), 1.0, atol=1e-5)

    print("KERNEL_OK")
</pallas_src>

<mosaic_0001>
module attributes {stable_mosaic.version = 11 : i64} {
  func.func @answer_point_kernel(%arg0: i32, %arg1: memref<8x32xf32, #tpu.memory_space<vmem>>, %arg2: memref<8x16x32xf32, #tpu.memory_space<vmem>>, %arg3: memref<8x16xf32, #tpu.memory_space<vmem>>, %arg4: memref<32x32xf32, #tpu.memory_space<vmem>>, %arg5: memref<32x32xf32, #tpu.memory_space<vmem>>, %arg6: memref<8x16xf32, #tpu.memory_space<vmem>>, %arg7: memref<8x16xf32, #tpu.memory_space<vmem>>, %arg8: memref<8x16xf32, #tpu.memory_space<vmem>>, %arg9: memref<8x16xf32, #tpu.memory_space<vmem>>) attributes {dimension_semantics = [#tpu.dimension_semantics<parallel>], iteration_bounds = array<i64: 2>, scalar_prefetch = 0 : i64, scratch_operands = 0 : i64, tpu.core_type = #tpu.core_type<tc>, window_params = [{transform_indices = @transform_0, window_bounds = array<i64: 8, 32>}, {transform_indices = @transform_1, window_bounds = array<i64: 8, 16, 32>}, {transform_indices = @transform_2, window_bounds = array<i64: 8, 16>}, {pipeline_mode = #tpu.pipeline_mode<synchronous>, transform_indices = @transform_3, window_bounds = array<i64: 32, 32>}, {pipeline_mode = #tpu.pipeline_mode<synchronous>, transform_indices = @transform_4, window_bounds = array<i64: 32, 32>}, {transform_indices = @transform_5, window_bounds = array<i64: 8, 16>}, {transform_indices = @transform_6, window_bounds = array<i64: 8, 16>}, {transform_indices = @transform_7, window_bounds = array<i64: 8, 16>}, {transform_indices = @transform_8, window_bounds = array<i64: 8, 16>}]} {
    %c0 = arith.constant 0 : index
    %c0_0 = arith.constant 0 : index
    %0 = vector.load %arg1[%c0, %c0_0] : memref<8x32xf32, #tpu.memory_space<vmem>>, vector<8x32xf32>
    %c0_1 = arith.constant 0 : index
    %c0_2 = arith.constant 0 : index
    %c0_3 = arith.constant 0 : index
    %1 = vector.load %arg2[%c0_1, %c0_2, %c0_3] : memref<8x16x32xf32, #tpu.memory_space<vmem>>, vector<8x16x32xf32>
    %c0_4 = arith.constant 0 : index
    %c0_5 = arith.constant 0 : index
    %2 = vector.load %arg3[%c0_4, %c0_5] : memref<8x16xf32, #tpu.memory_space<vmem>>, vector<8x16xf32>
    %c0_6 = arith.constant 0 : index
    %c0_7 = arith.constant 0 : index
    %3 = vector.load %arg4[%c0_6, %c0_7] : memref<32x32xf32, #tpu.memory_space<vmem>>, vector<32x32xf32>
    %cst = arith.constant dense<0.000000e+00> : vector<8x32xf32>
    %4 = tpu.matmul %0, %3, %cst {dimension_numbers = #tpu.dot_dimension_numbers<[1], [0], [0], [1], [0, 0, 1, 1], [], []>, precision = #tpu.contract_precision<fp32>} : vector<8x32xf32>, vector<32x32xf32>, vector<8x32xf32> -> vector<8x32xf32>
    %c0_8 = arith.constant 0 : index
    %c0_9 = arith.constant 0 : index
    %5 = vector.load %arg5[%c0_8, %c0_9] : memref<32x32xf32, #tpu.memory_space<vmem>>, vector<32x32xf32>
    %cst_10 = arith.constant dense<0.000000e+00> : vector<8x32xf32>
    %6 = tpu.matmul %0, %5, %cst_10 {dimension_numbers = #tpu.dot_dimension_numbers<[1], [0], [0], [1], [0, 0, 1, 1], [], []>, precision = #tpu.contract_precision<fp32>} : vector<8x32xf32>, vector<32x32xf32>, vector<8x32xf32> -> vector<8x32xf32>
    %7 = vector.shape_cast %4 : vector<8x32xf32> to vector<8x1x32xf32>
    %8 = vector.shape_cast %6 : vector<8x32xf32> to vector<8x1x32xf32>
    %9 = tpu.concatenate %7, %8 in 1 : vector<8x1x32xf32>, vector<8x1x32xf32> -> vector<8x2x32xf32>
    "tpu.trace_start"() <{level = 10 : i32, message = "bhc,bnc->bhn"}> : () -> ()
    %cst_11 = arith.constant dense<0.000000e+00> : vector<8x2x16xf32>
    %10 = tpu.matmul %9, %1, %cst_11 {dimension_numbers = #tpu.dot_dimension_numbers<[2], [2], [1], [1], [0, 0, 0, 1, 1, 1], [0], [0]>, precision = #tpu.contract_precision<fp32>} : vector<8x2x32xf32>, vector<8x16x32xf32>, vector<8x2x16xf32> -> vector<8x2x16xf32>
    "tpu.trace_stop"() : () -> ()
    %cst_12 = arith.constant 1.000000e+00 : f32
    %11 = vector.broadcast %cst_12 : f32 to vector<8x16xf32>
    %12 = arith.subf %11, %2 : vector<8x16xf32>
    %13 = vector.shape_cast %12 : vector<8x16xf32> to vector<8x1x16xf32>
    %cst_13 = arith.constant -1.000000e+30 : f32
    %14 = vector.broadcast %cst_13 : f32 to vector<8x1x16xf32>
    %15 = arith.mulf %13, %14 : vector<8x1x16xf32>
    %16 = vector.broadcast %15 : vector<8x1x16xf32> to vector<8x2x16xf32>
    %17 = arith.addf %10, %16 : vector<8x2x16xf32>
    %cst_14 = arith.constant dense<0xFF800000> : vector<8x2xf32>
    %18 = vector.multi_reduction <maximumf>, %17, %cst_14 [2] : vector<8x2x16xf32> to vector<8x2xf32>
    %19 = vector.shape_cast %18 : vector<8x2xf32> to vector<8x2x1xf32>
    %20 = vector.broadcast %19 : vector<8x2x1xf32> to vector<8x2x16xf32>
    %21 = arith.subf %17, %20 : vector<8x2x16xf32>
    %22 = math.exp %21 : vector<8x2x16xf32>
    %cst_15 = arith.constant dense<0.000000e+00> : vector<8x2xf32>
    %23 = vector.multi_reduction <add>, %22, %cst_15 [2] : vector<8x2x16xf32> to vector<8x2xf32>
    %24 = vector.shape_cast %23 : vector<8x2xf32> to vector<8x2x1xf32>
    %25 = tpu.reciprocal %24 : vector<8x2x1xf32> -> vector<8x2x1xf32>
    %26 = vector.broadcast %25 : vector<8x2x1xf32> to vector<8x2x16xf32>
    %27 = arith.mulf %22, %26 : vector<8x2x16xf32>
    %28 = vector.extract_strided_slice %17 {offsets = [0, 0, 0], sizes = [8, 1, 16], strides = [1, 1, 1]} : vector<8x2x16xf32> to vector<8x1x16xf32>
    %29 = vector.shape_cast %28 : vector<8x1x16xf32> to vector<8x16xf32>
    %c0_16 = arith.constant 0 : index
    %c0_17 = arith.constant 0 : index
    %30 = vector.load %arg8[%c0_16, %c0_17] : memref<8x16xf32, #tpu.memory_space<vmem>>, vector<8x16xf32>
    tpu.vector_store %arg8[%c0_16, %c0_17], %29 {strides = array<i32>} : memref<8x16xf32, #tpu.memory_space<vmem>>, vector<8x16xf32>,
    %31 = vector.extract_strided_slice %17 {offsets = [0, 1, 0], sizes = [8, 1, 16], strides = [1, 1, 1]} : vector<8x2x16xf32> to vector<8x1x16xf32>
    %32 = vector.shape_cast %31 : vector<8x1x16xf32> to vector<8x16xf32>
    %c0_18 = arith.constant 0 : index
    %c0_19 = arith.constant 0 : index
    %33 = vector.load %arg9[%c0_18, %c0_19] : memref<8x16xf32, #tpu.memory_space<vmem>>, vector<8x16xf32>
    tpu.vector_store %arg9[%c0_18, %c0_19], %32 {strides = array<i32>} : memref<8x16xf32, #tpu.memory_space<vmem>>, vector<8x16xf32>,
    %34 = vector.extract_strided_slice %27 {offsets = [0, 0, 0], sizes = [8, 1, 16], strides = [1, 1, 1]} : vector<8x2x16xf32> to vector<8x1x16xf32>
    %35 = vector.shape_cast %34 : vector<8x1x16xf32> to vector<8x16xf32>
    %c0_20 = arith.constant 0 : index
    %c0_21 = arith.constant 0 : index
    %36 = vector.load %arg6[%c0_20, %c0_21] : memref<8x16xf32, #tpu.memory_space<vmem>>, vector<8x16xf32>
    tpu.vector_store %arg6[%c0_20, %c0_21], %35 {strides = array<i32>} : memref<8x16xf32, #tpu.memory_space<vmem>>, vector<8x16xf32>,
    %37 = vector.extract_strided_slice %27 {offsets = [0, 1, 0], sizes = [8, 1, 16], strides = [1, 1, 1]} : vector<8x2x16xf32> to vector<8x1x16xf32>
    %38 = vector.shape_cast %37 : vector<8x1x16xf32> to vector<8x16xf32>
    %c0_22 = arith.constant 0 : index
    %c0_23 = arith.constant 0 : index
    %39 = vector.load %arg7[%c0_22, %c0_23] : memref<8x16xf32, #tpu.memory_space<vmem>>, vector<8x16xf32>
    tpu.vector_store %arg7[%c0_22, %c0_23], %38 {strides = array<i32>} : memref<8x16xf32, #tpu.memory_space<vmem>>, vector<8x16xf32>,
    return
  }
  func.func @transform_0(%arg0: i32) -> (i32, i32) {
    %c0_i32 = arith.constant 0 : i32
    %c0_i32_0 = arith.constant 0 : i32
    return %arg0, %c0_i32 : i32, i32
  }
  func.func @transform_1(%arg0: i32) -> (i32, i32, i32) {
    %c0_i32 = arith.constant 0 : i32
    %c0_i32_0 = arith.constant 0 : i32
    %c0_i32_1 = arith.constant 0 : i32
    return %arg0, %c0_i32, %c0_i32_0 : i32, i32, i32
  }
  func.func @transform_2(%arg0: i32) -> (i32, i32) {
    %c0_i32 = arith.constant 0 : i32
    %c0_i32_0 = arith.constant 0 : i32
    return %arg0, %c0_i32 : i32, i32
  }
  func.func @transform_3(%arg0: i32) -> (i32, i32) {
    %c0_i32 = arith.constant 0 : i32
    %c0_i32_0 = arith.constant 0 : i32
    %c0_i32_1 = arith.constant 0 : i32
    return %c0_i32, %c0_i32_0 : i32, i32
  }
  func.func @transform_4(%arg0: i32) -> (i32, i32) {
    %c0_i32 = arith.constant 0 : i32
    %c0_i32_0 = arith.constant 0 : i32
    %c0_i32_1 = arith.constant 0 : i32
    return %c0_i32, %c0_i32_0 : i32, i32
  }
  func.func @transform_5(%arg0: i32) -> (i32, i32) {
    %c0_i32 = arith.constant 0 : i32
    %c0_i32_0 = arith.constant 0 : i32
    return %arg0, %c0_i32 : i32, i32
  }
  func.func @transform_6(%arg0: i32) -> (i32, i32) {
    %c0_i32 = arith.constant 0 : i32
    %c0_i32_0 = arith.constant 0 : i32
    return %arg0, %c0_i32 : i32, i32
  }
  func.func @transform_7(%arg0: i32) -> (i32, i32) {
    %c0_i32 = arith.constant 0 : i32
    %c0_i32_0 = arith.constant 0 : i32
    return %arg0, %c0_i32 : i32, i32
  }
  func.func @transform_8(%arg0: i32) -> (i32, i32) {
    %c0_i32 = arith.constant 0 : i32
    %c0_i32_0 = arith.constant 0 : i32
    return %arg0, %c0_i32 : i32, i32
  }
}

</mosaic_0001>

<llo_original>
// kernel: tpu_custom_call.1
$region0: #{tpu_custom_call.1}
  #allocation0 [shape = 'u32[]', space=smem, size = 0x4, offset = 0x4, fixed_abs, tag = 'smem constant byte address 0x4 - core index']
  #allocation1 [shape = 'u32[72,128]{1,0:T(1,128)}', space=vmem, size = 0x9000, scoped, tag = 'internal scratch']
  %s0 = inlined_call_operand.hbm [shape: f32[16,32], index: 0, kind: input, shape index: {}]
  %s1 = inlined_call_operand.hbm [shape: f32[16,16,32], index: 1, kind: input, shape index: {}]
  %s2 = inlined_call_operand.hbm [shape: f32[16,16], index: 2, kind: input, shape index: {}]
  %s3 = inlined_call_operand.hbm [shape: f32[32,32], index: 3, kind: input, shape index: {}]
  %s4 = inlined_call_operand.hbm [shape: f32[32,32], index: 4, kind: input, shape index: {}]
  %s5 = inlined_call_operand.hbm [shape: f32[16,16], index: 5, kind: output, shape index: {0}]
  %s6 = inlined_call_operand.hbm [shape: f32[16,16], index: 6, kind: output, shape index: {1}]
  %s7 = inlined_call_operand.hbm [shape: f32[16,16], index: 7, kind: output, shape index: {2}]
  %s8 = inlined_call_operand.hbm [shape: f32[16,16], index: 8, kind: output, shape index: {3}]
  %9 = xla_tuple %s5, %s6, %s7, %s8
  %s10 = sld [smem:[#allocation0]]
  $region97: #{tpu_custom_call.1} parent=0
    _
  %s12 = ssub.s32 1, %s10
  %s13 = scalar_select 0, %s12, %s10
  $region1: #{tpu_custom_call.1} parent=0
    #allocation2 [shape = 'u8[8192]{0}', space=vmem, size = 0x2000, scoped, tag = 'input window, operand 0']
    #allocation3 [shape = 's32[2]{0}', space=sflag, size = 0x8, scoped, tag = 'scoped memory for tpu_custom_call.1']
    #allocation4 [shape = 's32[2]{0}', space=sflag, size = 0x8, scoped, tag = 'scoped memory for tpu_custom_call.1']
    #allocation5 [shape = 'u8[131072]{0}', space=vmem, size = 0x20000, scoped, tag = 'input window, operand 1']
    #allocation6 [shape = 's32[2]{0}', space=sflag, size = 0x8, scoped, tag = 'scoped memory for tpu_custom_call.1']
    #allocation7 [shape = 'u8[8192]{0}', space=vmem, size = 0x2000, scoped, tag = 'input window, operand 2']
    #allocation8 [shape = 'u8[16384]{0}', space=vmem, size = 0x4000, scoped, tag = 'input window, operand 3, single buffered']
    #allocation9 [shape = 's32[1]{0}', space=sflag, size = 0x4, scoped, tag = 'scoped memory for tpu_custom_call.1']
    #allocation10 [shape = 'u8[16384]{0}', space=vmem, size = 0x4000, scoped, tag = 'input window, operand 4, single buffered']
    #allocation11 [shape = 'u8[8192]{0}', space=vmem, size = 0x2000, scoped, tag = 'output window, operand 0']
    #allocation12 [shape = 'u8[8192]{0}', space=vmem, size = 0x2000, scoped, tag = 'output window, operand 1']
    #allocation13 [shape = 's32[2]{0}', space=sflag, size = 0x8, scoped, tag = 'scoped memory for tpu_custom_call.1']
    #allocation14 [shape = 'u8[8192]{0}', space=vmem, size = 0x2000, scoped, tag = 'output window, operand 2']
    #allocation15 [shape = 'u8[8192]{0}', space=vmem, size = 0x2000, scoped, tag = 'output window, operand 3']
    #allocation16 [shape = 's32[2]{0}', space=sflag, size = 0x8, scoped, tag = 'scoped memory for tpu_custom_call.1']
    %14 = vsyncpa [#allocation3], 0
    %s15 = scalar_lea.sflag [#allocation3], 1
    %16 = vsyncpa %s15, 0
    %17 = vsyncpa [#allocation6], 0
    %s18 = scalar_lea.sflag [#allocation6], 1
    %19 = vsyncpa %s18, 0
    %20 = vsyncpa [#allocation9], 0
    %21 = vsyncpa [#allocation4], 0
    %s22 = scalar_lea.sflag [#allocation4], 1
    %23 = vsyncpa %s22, 0
    %24 = vsyncpa [#allocation13], 0
    %s25 = scalar_lea.sflag [#allocation13], 1
    %26 = vsyncpa %s25, 0
    %27 = vsyncpa [#allocation16], 0
    %s28 = scalar_lea.sflag [#allocation16], 1
    %29 = vsyncpa %s28, 0
    loop: start=0, step=1, limit=4
    $region2: #{tpu_custom_call.1} parent=1 // loop_pre_header
      _
    $region3: #{tpu_custom_call.1} parent=1 // loop_header
      %s31 = sphi 0, %s35
      %p32 = scmp.ge.s32.totalorder %s31, 4
      %s41 = sphi 0, %s43
      %s44 = sphi 0, %s41
      %s45 = sphi 0, %s44
      %s61 = sphi 0, %s45
      %s67 = sphi 0, %s69
      %s70 = sphi 0, %s67
      %s71 = sphi 0, %s70
      %s87 = sphi 0, %s71
      %s93 = sphi 0, %s95
      %s96 = sphi 0, %s93
      %s97 = sphi 0, %s96
      %s113 = sphi 0, %s97
      %s117 = sphi 0, %s117
      %s119 = sphi 0, %s117
      %s120 = sphi 0, %s119
      %s134 = sphi 0, %s120
      %s138 = sphi 0, %s138
      %s140 = sphi 0, %s138
      %s141 = sphi 0, %s140
      %s155 = sphi 0, %s141
      %s161 = sphi 0, %s163
      %s164 = sphi 0, %s161
      %s165 = sphi 0, %s164
      %s181 = sphi 0, %s165
      %s187 = sphi 0, %s189
      %s190 = sphi 0, %s187
      %s191 = sphi 0, %s190
      %s207 = sphi 0, %s191
      %s213 = sphi 0, %s215
      %s216 = sphi 0, %s213
      %s217 = sphi 0, %s216
      %s233 = sphi 0, %s217
      %s239 = sphi 0, %s241
      %s242 = sphi 0, %s239
      %s243 = sphi 0, %s242
      %s259 = sphi 0, %s243
    $region4: #{tpu_custom_call.1} parent=1 // loop_header_branch
      %34 = sbr.rel (%p32) target = $region8
    $region5: #{tpu_custom_call.1} parent=1 // loop_body
      %s36 = ssub.s32 %s31, 1
      %s37 = ssub.s32 %s31, 2
      %s38 = sadd.s32 %s31, 1
      %s39 = ssub.s32 %s31, %s38
      %p40 = scmp.eq.s32.totalorder %s39, 0
      %s42 = sadd.s32 %s41, 1
      %s43 = scalar_select %p40, %s41, %s42
      %p46 = pneg %p40
      %p47 = scmp.eq.s32.totalorder %s31, 1
      %p48 = por %p46, %p47
      %p49 = scmp.ne.s32.totalorder %s41, %s44
      %p50 = scmp.eq.s32.totalorder %s31, 0
      %p51 = por %p49, %p50
      %p52 = scmp.ne.s32.totalorder %s41, %s44
      %p53 = scmp.eq.s32.totalorder %s36, 1
      %p54 = por %p52, %p53
      %p55 = scmp.ne.s32.totalorder %s44, %s45
      %p56 = scmp.eq.s32.totalorder %s36, 0
      %p57 = por %p55, %p56
      %p58 = scmp.ne.s32.totalorder %s44, %s45
      %p59 = scmp.eq.s32.totalorder %s37, 1
      %p60 = por %p58, %p59
      %p62 = scmp.ne.s32.totalorder %s45, %s61
      %p63 = scmp.eq.s32.totalorder %s37, 0
      %p64 = por %p62, %p63
      %s65 = ssub.s32 %s31, %s38
      %p66 = scmp.eq.s32.totalorder %s65, 0
      %s68 = sadd.s32 %s67, 1
      %s69 = scalar_select %p66, %s67, %s68
      %p72 = pneg %p66
      %p73 = scmp.eq.s32.totalorder %s31, 1
      %p74 = por %p72, %p73
      %p75 = scmp.ne.s32.totalorder %s67, %s70
      %p76 = scmp.eq.s32.totalorder %s31, 0
      %p77 = por %p75, %p76
      %p78 = scmp.ne.s32.totalorder %s67, %s70
      %p79 = scmp.eq.s32.totalorder %s36, 1
      %p80 = por %p78, %p79
      %p81 = scmp.ne.s32.totalorder %s70, %s71
      %p82 = scmp.eq.s32.totalorder %s36, 0
      %p83 = por %p81, %p82
      %p84 = scmp.ne.s32.totalorder %s70, %s71
      %p85 = scmp.eq.s32.totalorder %s37, 1
      %p86 = por %p84, %p85
      %p88 = scmp.ne.s32.totalorder %s71, %s87
      %p89 = scmp.eq.s32.totalorder %s37, 0
      %p90 = por %p88, %p89
      %s91 = ssub.s32 %s31, %s38
      %p92 = scmp.eq.s32.totalorder %s91, 0
      %s94 = sadd.s32 %s93, 1
      %s95 = scalar_select %p92, %s93, %s94
      %p98 = pneg %p92
      %p99 = scmp.eq.s32.totalorder %s31, 1
      %p100 = por %p98, %p99
      %p101 = scmp.ne.s32.totalorder %s93, %s96
      %p102 = scmp.eq.s32.totalorder %s31, 0
      %p103 = por %p101, %p102
      %p104 = scmp.ne.s32.totalorder %s93, %s96
      %p105 = scmp.eq.s32.totalorder %s36, 1
      %p106 = por %p104, %p105
      %p107 = scmp.ne.s32.totalorder %s96, %s97
      %p108 = scmp.eq.s32.totalorder %s36, 0
      %p109 = por %p107, %p108
      %p110 = scmp.ne.s32.totalorder %s96, %s97
      %p111 = scmp.eq.s32.totalorder %s37, 1
      %p112 = por %p110, %p111
      %p114 = scmp.ne.s32.totalorder %s97, %s113
      %p115 = scmp.eq.s32.totalorder %s37, 0
      %p116 = por %p114, %p115
      %s118 = sadd.s32 %s117, 1
      %p121 = scmp.eq.s32.totalorder %s31, 1
      %p122 = scmp.ne.s32.totalorder %s117, %s119
      %p123 = scmp.eq.s32.totalorder %s31, 0
      %p124 = por %p122, %p123
      %p125 = scmp.ne.s32.totalorder %s117, %s119
      %p126 = scmp.eq.s32.totalorder %s36, 1
      %p127 = por %p125, %p126
      %p128 = scmp.ne.s32.totalorder %s119, %s120
      %p129 = scmp.eq.s32.totalorder %s36, 0
      %p130 = por %p128, %p129
      %p131 = scmp.ne.s32.totalorder %s119, %s120
      %p132 = scmp.eq.s32.totalorder %s37, 1
      %p133 = por %p131, %p132
      %p135 = scmp.ne.s32.totalorder %s120, %s134
      %p136 = scmp.eq.s32.totalorder %s37, 0
      %p137 = por %p135, %p136
      %s139 = sadd.s32 %s138, 1
      %p142 = scmp.eq.s32.totalorder %s31, 1
      %p143 = scmp.ne.s32.totalorder %s138, %s140
      %p144 = scmp.eq.s32.totalorder %s31, 0
      %p145 = por %p143, %p144
      %p146 = scmp.ne.s32.totalorder %s138, %s140
      %p147 = scmp.eq.s32.totalorder %s36, 1
      %p148 = por %p146, %p147
      %p149 = scmp.ne.s32.totalorder %s140, %s141
      %p150 = scmp.eq.s32.totalorder %s36, 0
      %p151 = por %p149, %p150
      %p152 = scmp.ne.s32.totalorder %s140, %s141
      %p153 = scmp.eq.s32.totalorder %s37, 1
      %p154 = por %p152, %p153
      %p156 = scmp.ne.s32.totalorder %s141, %s155
      %p157 = scmp.eq.s32.totalorder %s37, 0
      %p158 = por %p156, %p157
      %s159 = ssub.s32 %s31, %s38
      %p160 = scmp.eq.s32.totalorder %s159, 0
      %s162 = sadd.s32 %s161, 1
      %s163 = scalar_select %p160, %s161, %s162
      %p166 = pneg %p160
      %p167 = scmp.eq.s32.totalorder %s31, 1
      %p168 = por %p166, %p167
      %p169 = scmp.ne.s32.totalorder %s161, %s164
      %p170 = scmp.eq.s32.totalorder %s31, 0
      %p171 = por %p169, %p170
      %p172 = scmp.ne.s32.totalorder %s161, %s164
      %p173 = scmp.eq.s32.totalorder %s36, 1
      %p174 = por %p172, %p173
      %p175 = scmp.ne.s32.totalorder %s164, %s165
      %p176 = scmp.eq.s32.totalorder %s36, 0
      %p177 = por %p175, %p176
      %p178 = scmp.ne.s32.totalorder %s164, %s165
      %p179 = scmp.eq.s32.totalorder %s37, 1
      %p180 = por %p178, %p179
      %p182 = scmp.ne.s32.totalorder %s165, %s181
      %p183 = scmp.eq.s32.totalorder %s37, 0
      %p184 = por %p182, %p183
      %s185 = ssub.s32 %s31, %s38
      %p186 = scmp.eq.s32.totalorder %s185, 0
      %s188 = sadd.s32 %s187, 1
      %s189 = scalar_select %p186, %s187, %s188
      %p192 = pneg %p186
      %p193 = scmp.eq.s32.totalorder %s31, 1
      %p194 = por %p192, %p193
      %p195 = scmp.ne.s32.totalorder %s187, %s190
      %p196 = scmp.eq.s32.totalorder %s31, 0
      %p197 = por %p195, %p196
      %p198 = scmp.ne.s32.totalorder %s187, %s190
      %p199 = scmp.eq.s32.totalorder %s36, 1
      %p200 = por %p198, %p199
      %p201 = scmp.ne.s32.totalorder %s190, %s191
      %p202 = scmp.eq.s32.totalorder %s36, 0
      %p203 = por %p201, %p202
      %p204 = scmp.ne.s32.totalorder %s190, %s191
      %p205 = scmp.eq.s32.totalorder %s37, 1
      %p206 = por %p204, %p205
      %p208 = scmp.ne.s32.totalorder %s191, %s207
      %p209 = scmp.eq.s32.totalorder %s37, 0
      %p210 = por %p208, %p209
      %s211 = ssub.s32 %s31, %s38
      %p212 = scmp.eq.s32.totalorder %s211, 0
      %s214 = sadd.s32 %s213, 1
      %s215 = scalar_select %p212, %s213, %s214
      %p218 = pneg %p212
      %p219 = scmp.eq.s32.totalorder %s31, 1
      %p220 = por %p218, %p219
      %p221 = scmp.ne.s32.totalorder %s213, %s216
      %p222 = scmp.eq.s32.totalorder %s31, 0
      %p223 = por %p221, %p222
      %p224 = scmp.ne.s32.totalorder %s213, %s216
      %p225 = scmp.eq.s32.totalorder %s36, 1
      %p226 = por %p224, %p225
      %p227 = scmp.ne.s32.totalorder %s216, %s217
      %p228 = scmp.eq.s32.totalorder %s36, 0
      %p229 = por %p227, %p228
      %p230 = scmp.ne.s32.totalorder %s216, %s217
      %p231 = scmp.eq.s32.totalorder %s37, 1
      %p232 = por %p230, %p231
      %p234 = scmp.ne.s32.totalorder %s217, %s233
      %p235 = scmp.eq.s32.totalorder %s37, 0
      %p236 = por %p234, %p235
      %s237 = ssub.s32 %s31, %s38
      %p238 = scmp.eq.s32.totalorder %s237, 0
      %s240 = sadd.s32 %s239, 1
      %s241 = scalar_select %p238, %s239, %s240
      %p244 = pneg %p238
      %p245 = scmp.eq.s32.totalorder %s31, 1
      %p246 = por %p244, %p245
      %p247 = scmp.ne.s32.totalorder %s239, %s242
      %p248 = scmp.eq.s32.totalorder %s31, 0
      %p249 = por %p247, %p248
      %p250 = scmp.ne.s32.totalorder %s239, %s242
      %p251 = scmp.eq.s32.totalorder %s36, 1
      %p252 = por %p250, %p251
      %p253 = scmp.ne.s32.totalorder %s242, %s243
      %p254 = scmp.eq.s32.totalorder %s36, 0
      %p255 = por %p253, %p254
      %p256 = scmp.ne.s32.totalorder %s242, %s243
      %p257 = scmp.eq.s32.totalorder %s37, 1
      %p258 = por %p256, %p257
      %p260 = scmp.ne.s32.totalorder %s243, %s259
      %p261 = scmp.eq.s32.totalorder %s37, 0
      %p262 = por %p260, %p261
      %p263 = scmp.le.s32.totalorder 1, %s31
      %p264 = scmp.lt.s32.totalorder %s31, 3
      %p265 = pnand %p263, %p264
      %p266 = pneg %p265
      // Predicated region
      $region9: #{tpu_custom_call.1} parent=5 // pred_check
        _
      $region10: #{tpu_custom_call.1} parent=5 // pred_check_branch
        %268 = sbr.rel (%p265) target = $region12
      $region11: #{tpu_custom_call.1} parent=5 // pred_region
        %s269 = ssub.s32 %s31, 1
        // Predicated region
        $region13: #{tpu_custom_call.1} parent=11 // pred_check
          %p270 = pneg %p130
        $region14: #{tpu_custom_call.1} parent=11 // pred_check_branch
          %272 = sbr.rel (%p270) target = $region16
        $region15: #{tpu_custom_call.1} parent=11 // pred_region
          %274 = vsyncadd [#allocation9], 0
          %s275 = sshll.u32 %s3, 4
          %s276 = int_to_ptr.hbm [resolvable:$true] %s275
          %s277 = sshll.u32 [#allocation8], 4
          %s278 = int_to_ptr.vmem [resolvable:$true] %s277
          %283 = dma.hbm_to_vmem [thread:$0]  %s276, 512, %s278, [#allocation9], 128, 128, 8
        $region16: #{tpu_custom_call.1} parent=11 // pred_fallthru
          _
        // Predicated region
        $region17: #{tpu_custom_call.1} parent=11 // pred_check
          %p284 = pneg %p151
        $region18: #{tpu_custom_call.1} parent=11 // pred_check_branch
          %286 = sbr.rel (%p284) target = $region20
        $region19: #{tpu_custom_call.1} parent=11 // pred_region
          %288 = vsyncadd [#allocation9], 0
          %s289 = sshll.u32 %s4, 4
          %s290 = int_to_ptr.hbm [resolvable:$true] %s289
          %s291 = sshll.u32 [#allocation10], 4
          %s292 = int_to_ptr.vmem [resolvable:$true] %s291
          %297 = dma.hbm_to_vmem [thread:$0]  %s290, 512, %s292, [#allocation9], 128, 128, 8
        $region20: #{tpu_custom_call.1} parent=11 // pred_fallthru
          _
      $region12: #{tpu_custom_call.1} parent=5 // pred_fallthru
        _
      %p298 = scmp.lt.s32.totalorder %s31, 2
      // Predicated region
      $region21: #{tpu_custom_call.1} parent=5 // pred_check
        %p299 = pneg %p298
      $region22: #{tpu_custom_call.1} parent=5 // pred_check_branch
        %301 = sbr.rel (%p299) target = $region24
      $region23: #{tpu_custom_call.1} parent=5 // pred_region
        // Predicated region
        $region25: #{tpu_custom_call.1} parent=23 // pred_check
          %p302 = pneg %p51
        $region26: #{tpu_custom_call.1} parent=23 // pred_check_branch
          %304 = sbr.rel (%p302) target = $region28
        $region27: #{tpu_custom_call.1} parent=23 // pred_region
          %s305 = sand.u32 %s41, 1
          %s306 = scalar_lea.sflag [#allocation3], %s305
          %s307 = sand.u32 %s41, 1
          %s308 = smul.addr %s307, 8
          %s309 = scalar_lea.vmem [#allocation2], %s308
          %311 = vsyncadd %s306, 0
          %s312 = smul.addr %s31, 8
          %s313 = scalar_lea.hbm %s0, %s312
          %s315 = sshll.u32 %s313, 4
          %s316 = int_to_ptr.hbm [resolvable:$true] %s315
          %s317 = sshll.u32 %s309, 4
          %s318 = int_to_ptr.vmem [resolvable:$true] %s317
          %320 = dma.hbm_to_vmem [thread:$0]  %s316, 128, %s318, %s306
        $region28: #{tpu_custom_call.1} parent=23 // pred_fallthru
          _
        // Predicated region
        $region29: #{tpu_custom_call.1} parent=23 // pred_check
          %p321 = pneg %p77
        $region30: #{tpu_custom_call.1} parent=23 // pred_check_branch
          %323 = sbr.rel (%p321) target = $region32
        $region31: #{tpu_custom_call.1} parent=23 // pred_region
          %s324 = sand.u32 %s31, 1
          %s325 = scalar_lea.sflag [#allocation6], %s324
          %s326 = sand.u32 %s67, 1
          %s327 = smul.addr %s326, 128
          %s328 = scalar_lea.vmem [#allocation5], %s327
          %s329 = smul.u32 8, %s31
          %331 = vsyncadd %s325, 0
          %s332 = smul.addr %s329, 2
          %s333 = smul.addr %s332, 8
          %s334 = scalar_lea.hbm %s1, %s333
          %s335 = sshll.u32 %s334, 4
          %s336 = int_to_ptr.hbm [resolvable:$true] %s335
          %s337 = sshll.u32 %s328, 4
          %s338 = int_to_ptr.vmem [resolvable:$true] %s337
          %343 = dma.hbm_to_vmem [thread:$0]  %s336, 2048, %s338, %s325, 128, 128, 8
        $region32: #{tpu_custom_call.1} parent=23 // pred_fallthru
          _
        // Predicated region
        $region33: #{tpu_custom_call.1} parent=23 // pred_check
          %p344 = pneg %p103
        $region34: #{tpu_custom_call.1} parent=23 // pred_check_branch
          %346 = sbr.rel (%p344) target = $region36
        $region35: #{tpu_custom_call.1} parent=23 // pred_region
          %s347 = sand.u32 %s31, 1
          %s348 = scalar_lea.sflag [#allocation6], %s347
          %s349 = sand.u32 %s93, 1
          %s350 = smul.addr %s349, 8
          %s351 = scalar_lea.vmem [#allocation7], %s350
          %353 = vsyncadd %s348, 0
          %s354 = smul.addr %s31, 8
          %s355 = scalar_lea.hbm %s2, %s354
          %s357 = sshll.u32 %s355, 4
          %s358 = int_to_ptr.hbm [resolvable:$true] %s357
          %s359 = sshll.u32 %s351, 4
          %s360 = int_to_ptr.vmem [resolvable:$true] %s359
          %362 = dma.hbm_to_vmem [thread:$0]  %s358, 128, %s360, %s348
        $region36: #{tpu_custom_call.1} parent=23 // pred_fallthru
          _
      $region24: #{tpu_custom_call.1} parent=5 // pred_fallthru
        _
      %p363 = scmp.le.s32.totalorder 1, %s31
      %p364 = scmp.lt.s32.totalorder %s31, 3
      %p365 = pnand %p363, %p364
      %p366 = pneg %p365
      // Predicated region
      $region37: #{tpu_custom_call.1} parent=5 // pred_check
        _
      $region38: #{tpu_custom_call.1} parent=5 // pred_check_branch
        %368 = sbr.rel (%p365) target = $region40
      $region39: #{tpu_custom_call.1} parent=5 // pred_region
        %s369 = ssub.s32 %s31, 1
        %s370 = sand.u32 %s44, 1
        %s371 = scalar_lea.sflag [#allocation3], %s370
        %s372 = sand.u32 %s44, 1
        %s373 = smul.addr %s372, 8
        %s374 = scalar_lea.vmem [#allocation2], %s373
        // Predicated region
        $region41: #{tpu_custom_call.1} parent=39 // pred_check
          %p375 = pneg %p57
        $region42: #{tpu_custom_call.1} parent=39 // pred_check_branch
          %377 = sbr.rel (%p375) target = $region44
        $region43: #{tpu_custom_call.1} parent=39 // pred_region
          %379 = dma.done %s371, 128
        $region44: #{tpu_custom_call.1} parent=39 // pred_fallthru
          _
        %s380 = sand.u32 %s36, 1
        %s381 = scalar_lea.sflag [#allocation6], %s380
        %s382 = sand.u32 %s70, 1
        %s383 = smul.addr %s382, 128
        %s384 = scalar_lea.vmem [#allocation5], %s383
        // Predicated region
        $region45: #{tpu_custom_call.1} parent=39 // pred_check
          %p385 = pneg %p83
        $region46: #{tpu_custom_call.1} parent=39 // pred_check_branch
          %387 = sbr.rel (%p385) target = $region48
        $region47: #{tpu_custom_call.1} parent=39 // pred_region
          %389 = dma.done %s381, 2048
        $region48: #{tpu_custom_call.1} parent=39 // pred_fallthru
          _
        %s390 = sand.u32 %s36, 1
        %s391 = scalar_lea.sflag [#allocation6], %s390
        %s392 = sand.u32 %s96, 1
        %s393 = smul.addr %s392, 8
        %s394 = scalar_lea.vmem [#allocation7], %s393
        // Predicated region
        $region49: #{tpu_custom_call.1} parent=39 // pred_check
          %p395 = pneg %p109
        $region50: #{tpu_custom_call.1} parent=39 // pred_check_branch
          %397 = sbr.rel (%p395) target = $region52
        $region51: #{tpu_custom_call.1} parent=39 // pred_region
          %399 = dma.done %s391, 128
        $region52: #{tpu_custom_call.1} parent=39 // pred_fallthru
          _
        // Predicated region
        $region53: #{tpu_custom_call.1} parent=39 // pred_check
          %p400 = pneg %p130
        $region54: #{tpu_custom_call.1} parent=39 // pred_check_branch
          %402 = sbr.rel (%p400) target = $region56
        $region55: #{tpu_custom_call.1} parent=39 // pred_region
          %404 = dma.done [#allocation9], 512
        $region56: #{tpu_custom_call.1} parent=39 // pred_fallthru
          _
        // Predicated region
        $region57: #{tpu_custom_call.1} parent=39 // pred_check
          %p405 = pneg %p151
        $region58: #{tpu_custom_call.1} parent=39 // pred_check_branch
          %407 = sbr.rel (%p405) target = $region60
        $region59: #{tpu_custom_call.1} parent=39 // pred_region
          %409 = dma.done [#allocation9], 512
        $region60: #{tpu_custom_call.1} parent=39 // pred_fallthru
          _
        %s410 = sand.u32 %s44, 1
        %s411 = scalar_lea.sflag [#allocation3], %s410
        %s412 = sand.u32 %s44, 1
        %s413 = smul.addr %s412, 8
        %s414 = scalar_lea.vmem [#allocation2], %s413
        %p415 = pneg %p57
        %p416 = pneg %p54
        %s417 = sand.u32 %s36, 1
        %s418 = scalar_lea.sflag [#allocation6], %s417
        %s419 = sand.u32 %s70, 1
        %s420 = smul.addr %s419, 128
        %s421 = scalar_lea.vmem [#allocation5], %s420
        %p422 = pneg %p83
        %p423 = pneg %p80
        %s424 = sand.u32 %s36, 1
        %s425 = scalar_lea.sflag [#allocation6], %s424
        %s426 = sand.u32 %s96, 1
        %s427 = smul.addr %s426, 8
        %s428 = scalar_lea.vmem [#allocation7], %s427
        %p429 = pneg %p109
        %p430 = pneg %p106
        %p431 = pneg %p130
        %p432 = pneg %p127
        %p433 = pneg %p151
        %p434 = pneg %p148
        %p435 = pneg %p177
        %p436 = pneg %p174
        %s437 = sand.u32 %s164, 1
        %s438 = scalar_lea.sflag [#allocation4], %s437
        %s439 = sand.u32 %s164, 1
        %s440 = smul.addr %s439, 8
        %s441 = scalar_lea.vmem [#allocation11], %s440
        %p442 = pneg %p203
        %p443 = pneg %p200
        %s444 = sand.u32 %s36, 1
        %s445 = scalar_lea.sflag [#allocation13], %s444
        %s446 = sand.u32 %s190, 1
        %s447 = smul.addr %s446, 8
        %s448 = scalar_lea.vmem [#allocation12], %s447
        %p449 = pneg %p229
        %p450 = pneg %p226
        %s451 = sand.u32 %s36, 1
        %s452 = scalar_lea.sflag [#allocation13], %s451
        %s453 = sand.u32 %s216, 1
        %s454 = smul.addr %s453, 8
        %s455 = scalar_lea.vmem [#allocation14], %s454
        %p456 = pneg %p255
        %p457 = pneg %p252
        %s458 = sand.u32 %s242, 1
        %s459 = scalar_lea.sflag [#allocation16], %s458
        %s460 = sand.u32 %s242, 1
        %s461 = smul.addr %s460, 8
        %s462 = scalar_lea.vmem [#allocation15], %s461
        %s463 = smul.u32 8, %s36
        %v464 = vld [vmem:[%s374] sm:$0xff]
        %v465 = vld [vmem:[%s384] sm:$0xff]
        %v466 = vld [vmem:[%s384 + $0x8] sm:$0xff]
        %v467 = vld [vmem:[%s384 + $0x10] sm:$0xff]
        %v468 = vld [vmem:[%s384 + $0x18] sm:$0xff]
        %v469 = vld [vmem:[%s384 + $0x20] sm:$0xff]
        %v470 = vld [vmem:[%s384 + $0x28] sm:$0xff]
        %v471 = vld [vmem:[%s384 + $0x30] sm:$0xff]
        %v472 = vld [vmem:[%s384 + $0x38] sm:$0xff]
        %v473 = vld [vmem:[%s384 + $0x40] sm:$0xff]
        %v474 = vld [vmem:[%s384 + $0x48] sm:$0xff]
        %v475 = vld [vmem:[%s384 + $0x50] sm:$0xff]
        %v476 = vld [vmem:[%s384 + $0x58] sm:$0xff]
        %v477 = vld [vmem:[%s384 + $0x60] sm:$0xff]
        %v478 = vld [vmem:[%s384 + $0x68] sm:$0xff]
        %v479 = vld [vmem:[%s384 + $0x70] sm:$0xff]
        %v480 = vld [vmem:[%s384 + $0x78] sm:$0xff]
        %v481 = vld [vmem:[%s394] sm:$0xff]
        %v482 = vld [vmem:[#allocation8] sm:$0xff]
        %v483 = vld [vmem:[#allocation8 + $0x8] sm:$0xff]
        %v484 = vld [vmem:[#allocation8 + $0x10] sm:$0xff]
        %v485 = vld [vmem:[#allocation8 + $0x18] sm:$0xff]
        %vm486 = vcmask 261120
        %v488 = vsel %vm486, %v464, 0
        %490 = vmatpush.msra.mxu0 0.0
        %491 = vmatpush.msra.mxu0 0.0
        %492 = vmatpush.msra.mxu0 0.0
        %493 = vmatpush.msra.mxu0 0.0
        %494 = vmatpush.msra.mxu0 0.0
        %495 = vmatpush.msra.mxu0 0.0
        %496 = vmatpush.msra.mxu0 0.0
        %497 = vmatpush.msra.mxu0 0.0
        %498 = vmatpush.msra.mxu0 0.0
        %499 = vmatpush.msra.mxu0 0.0
        %500 = vmatpush.msra.mxu0 0.0
        %501 = vmatpush.msra.mxu0 0.0
        %v502 = vand.u32 %v485, 4294901760
        %503 = vmatpush.msra.mxu0 %v502
        %v504 = vand.u32 %v484, 4294901760
        %505 = vmatpush.msra.mxu0 %v504
        %v506 = vand.u32 %v483, 4294901760
        %507 = vmatpush.msra.mxu0 %v506
        %v508 = vand.u32 %v482, 4294901760
        %509 = vmatpush.msra.mxu0 %v508
        %v510 = vand.u32 %v488, 4294901760
        %v511 = vsub.f32 %v488, %v510
        %v512 = vand.u32 %v511, 4294901760
        %v513 = vsub.f32 %v511, %v512
        %v514 = vand.u32 %v513, 4294901760
        %515 = vmatmul.f32.gmra.mxu0 %v514
        %v516 = vpop.f32.mrf.mxu0
        %v517 = vadd.f32 0.0, %v516
        %518 = vdwg.mxu0
        %519 = vmatpush.msra.mxu0 0.0
        %520 = vmatpush.msra.mxu0 0.0
        %521 = vmatpush.msra.mxu0 0.0
        %522 = vmatpush.msra.mxu0 0.0
        %523 = vmatpush.msra.mxu0 0.0
        %524 = vmatpush.msra.mxu0 0.0
        %525 = vmatpush.msra.mxu0 0.0
        %526 = vmatpush.msra.mxu0 0.0
        %527 = vmatpush.msra.mxu0 0.0
        %528 = vmatpush.msra.mxu0 0.0
        %529 = vmatpush.msra.mxu0 0.0
        %530 = vmatpush.msra.mxu0 0.0
        %v531 = vand.u32 %v485, 4294901760
        %v532 = vsub.f32 %v485, %v531
        %v533 = vand.u32 %v532, 4294901760
        %v534 = vsub.f32 %v532, %v533
        %v535 = vand.u32 %v534, 4294901760
        %536 = vmatpush.msra.mxu0 %v535
        %v537 = vand.u32 %v484, 4294901760
        %v538 = vsub.f32 %v484, %v537
        %v539 = vand.u32 %v538, 4294901760
        %v540 = vsub.f32 %v538, %v539
        %v541 = vand.u32 %v540, 4294901760
        %542 = vmatpush.msra.mxu0 %v541
        %v543 = vand.u32 %v483, 4294901760
        %v544 = vsub.f32 %v483, %v543
        %v545 = vand.u32 %v544, 4294901760
        %v546 = vsub.f32 %v544, %v545
        %v547 = vand.u32 %v546, 4294901760
        %548 = vmatpush.msra.mxu0 %v547
        %v549 = vand.u32 %v482, 4294901760
        %v550 = vsub.f32 %v482, %v549
        %v551 = vand.u32 %v550, 4294901760
        %v552 = vsub.f32 %v550, %v551
        %v553 = vand.u32 %v552, 4294901760
        %554 = vmatpush.msra.mxu0 %v553
        %v555 = vand.u32 %v488, 4294901760
        %556 = vmatmul.f32.gmra.mxu0 %v555
        %v557 = vpop.f32.mrf.mxu0
        %v558 = vadd.f32 %v517, %v557
        %559 = vdwg.mxu0
        %560 = vmatpush.msra.mxu0 0.0
        %561 = vmatpush.msra.mxu0 0.0
        %562 = vmatpush.msra.mxu0 0.0
        %563 = vmatpush.msra.mxu0 0.0
        %564 = vmatpush.msra.mxu0 0.0
        %565 = vmatpush.msra.mxu0 0.0
        %566 = vmatpush.msra.mxu0 0.0
        %567 = vmatpush.msra.mxu0 0.0
        %568 = vmatpush.msra.mxu0 0.0
        %569 = vmatpush.msra.mxu0 0.0
        %570 = vmatpush.msra.mxu0 0.0
        %571 = vmatpush.msra.mxu0 0.0
        %v572 = vand.u32 %v485, 4294901760
        %v573 = vsub.f32 %v485, %v572
        %574 = vmatpush.msra.mxu0 %v573
        %v575 = vand.u32 %v484, 4294901760
        %v576 = vsub.f32 %v484, %v575
        %577 = vmatpush.msra.mxu0 %v576
        %v578 = vand.u32 %v483, 4294901760
        %v579 = vsub.f32 %v483, %v578
        %580 = vmatpush.msra.mxu0 %v579
        %v581 = vand.u32 %v482, 4294901760
        %v582 = vsub.f32 %v482, %v581
        %583 = vmatpush.msra.mxu0 %v582
        %v584 = vand.u32 %v488, 4294901760
        %v585 = vsub.f32 %v488, %v584
        %586 = vmatmul.f32.gmra.mxu0 %v585
        %v587 = vpop.f32.mrf.mxu0
        %v588 = vadd.f32 %v558, %v587
        %589 = vdwg.mxu0
        %590 = vmatpush.msra.mxu0 0.0
        %591 = vmatpush.msra.mxu0 0.0
        %592 = vmatpush.msra.mxu0 0.0
        %593 = vmatpush.msra.mxu0 0.0
        %594 = vmatpush.msra.mxu0 0.0
        %595 = vmatpush.msra.mxu0 0.0
        %596 = vmatpush.msra.mxu0 0.0
        %597 = vmatpush.msra.mxu0 0.0
        %598 = vmatpush.msra.mxu0 0.0
        %599 = vmatpush.msra.mxu0 0.0
        %600 = vmatpush.msra.mxu0 0.0
        %601 = vmatpush.msra.mxu0 0.0
        %v602 = vand.u32 %v485, 4294901760
        %603 = vmatpush.msra.mxu0 %v602
        %v604 = vand.u32 %v484, 4294901760
        %605 = vmatpush.msra.mxu0 %v604
        %v606 = vand.u32 %v483, 4294901760
        %607 = vmatpush.msra.mxu0 %v606
        %v608 = vand.u32 %v482, 4294901760
        %609 = vmatpush.msra.mxu0 %v608
        %v610 = vand.u32 %v488, 4294901760
        %v611 = vsub.f32 %v488, %v610
        %v612 = vand.u32 %v611, 4294901760
        %613 = vmatmul.f32.gmra.mxu0 %v612
        %v614 = vpop.f32.mrf.mxu0
        %v615 = vadd.f32 %v588, %v614
        %616 = vdwg.mxu0
        %617 = vmatpush.msra.mxu0 0.0
        %618 = vmatpush.msra.mxu0 0.0
        %619 = vmatpush.msra.mxu0 0.0
        %620 = vmatpush.msra.mxu0 0.0
        %621 = vmatpush.msra.mxu0 0.0
        %622 = vmatpush.msra.mxu0 0.0
        %623 = vmatpush.msra.mxu0 0.0
        %624 = vmatpush.msra.mxu0 0.0
        %625 = vmatpush.msra.mxu0 0.0
        %626 = vmatpush.msra.mxu0 0.0
        %627 = vmatpush.msra.mxu0 0.0
        %628 = vmatpush.msra.mxu0 0.0
        %v629 = vand.u32 %v485, 4294901760
        %v630 = vsub.f32 %v485, %v629
        %v631 = vand.u32 %v630, 4294901760
        %632 = vmatpush.msra.mxu0 %v631
        %v633 = vand.u32 %v484, 4294901760
        %v634 = vsub.f32 %v484, %v633
        %v635 = vand.u32 %v634, 4294901760
        %636 = vmatpush.msra.mxu0 %v635
        %v637 = vand.u32 %v483, 4294901760
        %v638 = vsub.f32 %v483, %v637
        %v639 = vand.u32 %v638, 4294901760
        %640 = vmatpush.msra.mxu0 %v639
        %v641 = vand.u32 %v482, 4294901760
        %v642 = vsub.f32 %v482, %v641
        %v643 = vand.u32 %v642, 4294901760
        %644 = vmatpush.msra.mxu0 %v643
        %v645 = vand.u32 %v488, 4294901760
        %646 = vmatmul.f32.gmra.mxu0 %v645
        %v647 = vpop.f32.mrf.mxu0
        %v648 = vadd.f32 %v615, %v647
        %649 = vdwg.mxu0
        %650 = vmatpush.msra.mxu0 0.0
        %651 = vmatpush.msra.mxu0 0.0
        %652 = vmatpush.msra.mxu0 0.0
        %653 = vmatpush.msra.mxu0 0.0
        %654 = vmatpush.msra.mxu0 0.0
        %655 = vmatpush.msra.mxu0 0.0
        %656 = vmatpush.msra.mxu0 0.0
        %657 = vmatpush.msra.mxu0 0.0
        %658 = vmatpush.msra.mxu0 0.0
        %659 = vmatpush.msra.mxu0 0.0
        %660 = vmatpush.msra.mxu0 0.0
        %661 = vmatpush.msra.mxu0 0.0
        %v662 = vand.u32 %v485, 4294901760
        %663 = vmatpush.msra.mxu0 %v662
        %v664 = vand.u32 %v484, 4294901760
        %665 = vmatpush.msra.mxu0 %v664
        %v666 = vand.u32 %v483, 4294901760
        %667 = vmatpush.msra.mxu0 %v666
        %v668 = vand.u32 %v482, 4294901760
        %669 = vmatpush.msra.mxu0 %v668
        %v670 = vand.u32 %v488, 4294901760
        %671 = vmatmul.f32.gmra.mxu0 %v670
        %v672 = vpop.f32.mrf.mxu0
        %v673 = vadd.f32 %v648, %v672
        %674 = vdwg.mxu0
        %v675 = vld [vmem:[#allocation10] sm:$0xff]
        %v676 = vld [vmem:[#allocation10 + $0x8] sm:$0xff]
        %v677 = vld [vmem:[#allocation10 + $0x10] sm:$0xff]
        %v678 = vld [vmem:[#allocation10 + $0x18] sm:$0xff]
        %679 = vmatpush.msra.mxu0 0.0
        %680 = vmatpush.msra.mxu0 0.0
        %681 = vmatpush.msra.mxu0 0.0
        %682 = vmatpush.msra.mxu0 0.0
        %683 = vmatpush.msra.mxu0 0.0
        %684 = vmatpush.msra.mxu0 0.0
        %685 = vmatpush.msra.mxu0 0.0
        %686 = vmatpush.msra.mxu0 0.0
        %687 = vmatpush.msra.mxu0 0.0
        %688 = vmatpush.msra.mxu0 0.0
        %689 = vmatpush.msra.mxu0 0.0
        %690 = vmatpush.msra.mxu0 0.0
        %v691 = vand.u32 %v678, 4294901760
        %692 = vmatpush.msra.mxu0 %v691
        %v693 = vand.u32 %v677, 4294901760
        %694 = vmatpush.msra.mxu0 %v693
        %v695 = vand.u32 %v676, 4294901760
        %696 = vmatpush.msra.mxu0 %v695
        %v697 = vand.u32 %v675, 4294901760
        %698 = vmatpush.msra.mxu0 %v697
        %v699 = vand.u32 %v488, 4294901760
        %v700 = vsub.f32 %v488, %v699
        %v701 = vand.u32 %v700, 4294901760
        %v702 = vsub.f32 %v700, %v701
        %v703 = vand.u32 %v702, 4294901760
        %704 = vmatmul.f32.gmra.mxu0 %v703
        %v705 = vpop.f32.mrf.mxu0
        %v706 = vadd.f32 0.0, %v705
        %707 = vdwg.mxu0
        %708 = vmatpush.msra.mxu0 0.0
        %709 = vmatpush.msra.mxu0 0.0
        %710 = vmatpush.msra.mxu0 0.0
        %711 = vmatpush.msra.mxu0 0.0
        %712 = vmatpush.msra.mxu0 0.0
        %713 = vmatpush.msra.mxu0 0.0
        %714 = vmatpush.msra.mxu0 0.0
        %715 = vmatpush.msra.mxu0 0.0
        %716 = vmatpush.msra.mxu0 0.0
        %717 = vmatpush.msra.mxu0 0.0
        %718 = vmatpush.msra.mxu0 0.0
        %719 = vmatpush.msra.mxu0 0.0
        %v720 = vand.u32 %v678, 4294901760
        %v721 = vsub.f32 %v678, %v720
        %v722 = vand.u32 %v721, 4294901760
        %v723 = vsub.f32 %v721, %v722
        %v724 = vand.u32 %v723, 4294901760
        %725 = vmatpush.msra.mxu0 %v724
        %v726 = vand.u32 %v677, 4294901760
        %v727 = vsub.f32 %v677, %v726
        %v728 = vand.u32 %v727, 4294901760
        %v729 = vsub.f32 %v727, %v728
        %v730 = vand.u32 %v729, 4294901760
        %731 = vmatpush.msra.mxu0 %v730
        %v732 = vand.u32 %v676, 4294901760
        %v733 = vsub.f32 %v676, %v732
        %v734 = vand.u32 %v733, 4294901760
        %v735 = vsub.f32 %v733, %v734
        %v736 = vand.u32 %v735, 4294901760
        %737 = vmatpush.msra.mxu0 %v736
        %v738 = vand.u32 %v675, 4294901760
        %v739 = vsub.f32 %v675, %v738
        %v740 = vand.u32 %v739, 4294901760
        %v741 = vsub.f32 %v739, %v740
        %v742 = vand.u32 %v741, 4294901760
        %743 = vmatpush.msra.mxu0 %v742
        %v744 = vand.u32 %v488, 4294901760
        %745 = vmatmul.f32.gmra.mxu0 %v744
        %v746 = vpop.f32.mrf.mxu0
        %v747 = vadd.f32 %v706, %v746
        %748 = vdwg.mxu0
        %749 = vmatpush.msra.mxu0 0.0
        %750 = vmatpush.msra.mxu0 0.0
        %751 = vmatpush.msra.mxu0 0.0
        %752 = vmatpush.msra.mxu0 0.0
        %753 = vmatpush.msra.mxu0 0.0
        %754 = vmatpush.msra.mxu0 0.0
        %755 = vmatpush.msra.mxu0 0.0
        %756 = vmatpush.msra.mxu0 0.0
        %757 = vmatpush.msra.mxu0 0.0
        %758 = vmatpush.msra.mxu0 0.0
        %759 = vmatpush.msra.mxu0 0.0
        %760 = vmatpush.msra.mxu0 0.0
        %v761 = vand.u32 %v678, 4294901760
        %v762 = vsub.f32 %v678, %v761
        %763 = vmatpush.msra.mxu0 %v762
        %v764 = vand.u32 %v677, 4294901760
        %v765 = vsub.f32 %v677, %v764
        %766 = vmatpush.msra.mxu0 %v765
        %v767 = vand.u32 %v676, 4294901760
        %v768 = vsub.f32 %v676, %v767
        %769 = vmatpush.msra.mxu0 %v768
        %v770 = vand.u32 %v675, 4294901760
        %v771 = vsub.f32 %v675, %v770
        %772 = vmatpush.msra.mxu0 %v771
        %v773 = vand.u32 %v488, 4294901760
        %v774 = vsub.f32 %v488, %v773
        %775 = vmatmul.f32.gmra.mxu0 %v774
        %v776 = vpop.f32.mrf.mxu0
        %v777 = vadd.f32 %v747, %v776
        %778 = vdwg.mxu0
        %779 = vmatpush.msra.mxu0 0.0
        %780 = vmatpush.msra.mxu0 0.0
        %781 = vmatpush.msra.mxu0 0.0
        %782 = vmatpush.msra.mxu0 0.0
        %783 = vmatpush.msra.mxu0 0.0
        %784 = vmatpush.msra.mxu0 0.0
        %785 = vmatpush.msra.mxu0 0.0
        %786 = vmatpush.msra.mxu0 0.0
        %787 = vmatpush.msra.mxu0 0.0
        %788 = vmatpush.msra.mxu0 0.0
        %789 = vmatpush.msra.mxu0 0.0
        %790 = vmatpush.msra.mxu0 0.0
        %v791 = vand.u32 %v678, 4294901760
        %792 = vmatpush.msra.mxu0 %v791
        %v793 = vand.u32 %v677, 4294901760
        %794 = vmatpush.msra.mxu0 %v793
        %v795 = vand.u32 %v676, 4294901760
        %796 = vmatpush.msra.mxu0 %v795
        %v797 = vand.u32 %v675, 4294901760
        %798 = vmatpush.msra.mxu0 %v797
        %v799 = vand.u32 %v488, 4294901760
        %v800 = vsub.f32 %v488, %v799
        %v801 = vand.u32 %v800, 4294901760
        %802 = vmatmul.f32.gmra.mxu0 %v801
        %v803 = vpop.f32.mrf.mxu0
        %v804 = vadd.f32 %v777, %v803
        %805 = vdwg.mxu0
        %806 = vmatpush.msra.mxu0 0.0
        %807 = vmatpush.msra.mxu0 0.0
        %808 = vmatpush.msra.mxu0 0.0
        %809 = vmatpush.msra.mxu0 0.0
        %810 = vmatpush.msra.mxu0 0.0
        %811 = vmatpush.msra.mxu0 0.0
        %812 = vmatpush.msra.mxu0 0.0
        %813 = vmatpush.msra.mxu0 0.0
        %814 = vmatpush.msra.mxu0 0.0
        %815 = vmatpush.msra.mxu0 0.0
        %816 = vmatpush.msra.mxu0 0.0
        %817 = vmatpush.msra.mxu0 0.0
        %v818 = vand.u32 %v678, 4294901760
        %v819 = vsub.f32 %v678, %v818
        %v820 = vand.u32 %v819, 4294901760
        %821 = vmatpush.msra.mxu0 %v820
        %v822 = vand.u32 %v677, 4294901760
        %v823 = vsub.f32 %v677, %v822
        %v824 = vand.u32 %v823, 4294901760
        %825 = vmatpush.msra.mxu0 %v824
        %v826 = vand.u32 %v676, 4294901760
        %v827 = vsub.f32 %v676, %v826
        %v828 = vand.u32 %v827, 4294901760
        %829 = vmatpush.msra.mxu0 %v828
        %v830 = vand.u32 %v675, 4294901760
        %v831 = vsub.f32 %v675, %v830
        %v832 = vand.u32 %v831, 4294901760
        %833 = vmatpush.msra.mxu0 %v832
        %v834 = vand.u32 %v488, 4294901760
        %835 = vmatmul.f32.gmra.mxu0 %v834
        %v836 = vpop.f32.mrf.mxu0
        %v837 = vadd.f32 %v804, %v836
        %838 = vdwg.mxu0
        %839 = vmatpush.msra.mxu0 0.0
        %840 = vmatpush.msra.mxu0 0.0
        %841 = vmatpush.msra.mxu0 0.0
        %842 = vmatpush.msra.mxu0 0.0
        %843 = vmatpush.msra.mxu0 0.0
        %844 = vmatpush.msra.mxu0 0.0
        %845 = vmatpush.msra.mxu0 0.0
        %846 = vmatpush.msra.mxu0 0.0
        %847 = vmatpush.msra.mxu0 0.0
        %848 = vmatpush.msra.mxu0 0.0
        %849 = vmatpush.msra.mxu0 0.0
        %850 = vmatpush.msra.mxu0 0.0
        %v851 = vand.u32 %v678, 4294901760
        %852 = vmatpush.msra.mxu0 %v851
        %v853 = vand.u32 %v677, 4294901760
        %854 = vmatpush.msra.mxu0 %v853
        %v855 = vand.u32 %v676, 4294901760
        %856 = vmatpush.msra.mxu0 %v855
        %v857 = vand.u32 %v675, 4294901760
        %858 = vmatpush.msra.mxu0 %v857
        %v859 = vand.u32 %v488, 4294901760
        %860 = vmatmul.f32.gmra.mxu0 %v859
        %v861 = vpop.f32.mrf.mxu0
        %v862 = vadd.f32 %v837, %v861
        %863 = vdwg.mxu0
        %v865 = vrot.slane %v673, 1
        %v866 = vrot.slane %v673, 2
        %v867 = vrot.slane %v673, 3
        %v868 = vrot.slane %v673, 4
        %v869 = vrot.slane %v673, 5
        %v870 = vrot.slane %v673, 6
        %v871 = vrot.slane %v673, 7
        %v880 = vrot.slane %v862, 1
        %v881 = vrot.slane %v862, 2
        %v882 = vrot.slane %v862, 3
        %v883 = vrot.slane %v862, 4
        %v884 = vrot.slane %v862, 5
        %v885 = vrot.slane %v862, 6
        %v886 = vrot.slane %v862, 7
        %v887 = vperm.slane %v862, 0
        %v888 = vperm.slane %v880, 0
        %v889 = vperm.slane %v881, 0
        %v890 = vperm.slane %v882, 0
        %v891 = vperm.slane %v883, 0
        %v892 = vperm.slane %v884, 0
        %v893 = vperm.slane %v885, 0
        %v894 = vperm.slane %v886, 0
        %vm903 = vcmask 1040384
        %v904 = vsel %vm903, %v673, %v887
        %v905 = vsel %vm903, %v865, %v888
        %v906 = vsel %vm903, %v866, %v889
        %v907 = vsel %vm903, %v867, %v890
        %v908 = vsel %vm903, %v868, %v891
        %v909 = vsel %vm903, %v869, %v892
        %v910 = vsel %vm903, %v870, %v893
        %v911 = vsel %vm903, %v871, %v894
        %v912 = vsub.f32 1.0, %v481
        %v914 = vrot.slane %v912, 1
        %v915 = vrot.slane %v912, 2
        %v916 = vrot.slane %v912, 3
        %v917 = vrot.slane %v912, 4
        %v918 = vrot.slane %v912, 5
        %v919 = vrot.slane %v912, 6
        %v920 = vrot.slane %v912, 7
        %v928 = vmul.f32 %v912, -1e+30
        %v929 = vmul.f32 %v914, -1e+30
        %v930 = vmul.f32 %v915, -1e+30
        %v931 = vmul.f32 %v916, -1e+30
        %v932 = vmul.f32 %v917, -1e+30
        %v933 = vmul.f32 %v918, -1e+30
        %v934 = vmul.f32 %v919, -1e+30
        %v935 = vmul.f32 %v920, -1e+30
        %v944 = vperm.slane %v928, 0
        %v945 = vperm.slane %v929, 0
        %v946 = vperm.slane %v930, 0
        %v947 = vperm.slane %v931, 0
        %v948 = vperm.slane %v932, 0
        %v949 = vperm.slane %v933, 0
        %v950 = vperm.slane %v934, 0
        %v951 = vperm.slane %v935, 0
        %v961 = vsel %vm486, %v904, 0
        %v964 = vsel %vm486, %v465, 0
        %v967 = vsel %vm486, %v466, 0
        %969 = vmatpush.xpose.msra.mxu0 0.0
        %970 = vmatpush.xpose.msra.mxu0 0.0
        %971 = vmatpush.xpose.msra.mxu0 0.0
        %972 = vmatpush.xpose.msra.mxu0 0.0
        %973 = vmatpush.xpose.msra.mxu0 0.0
        %974 = vmatpush.xpose.msra.mxu0 0.0
        %975 = vmatpush.xpose.msra.mxu0 0.0
        %976 = vmatpush.xpose.msra.mxu0 0.0
        %977 = vmatpush.xpose.msra.mxu0 0.0
        %978 = vmatpush.xpose.msra.mxu0 0.0
        %979 = vmatpush.xpose.msra.mxu0 0.0
        %980 = vmatpush.xpose.msra.mxu0 0.0
        %981 = vmatpush.xpose.msra.mxu0 0.0
        %982 = vmatpush.xpose.msra.mxu0 0.0
        %v983 = vand.u32 %v967, 4294901760
        %984 = vmatpush.xpose.msra.mxu0 %v983
        %v985 = vand.u32 %v964, 4294901760
        %986 = vmatpush.xpose.msra.mxu0 %v985
        %v987 = vand.u32 %v961, 4294901760
        %v988 = vsub.f32 %v961, %v987
        %v989 = vand.u32 %v988, 4294901760
        %v990 = vsub.f32 %v988, %v989
        %v991 = vand.u32 %v990, 4294901760
        %992 = vmatmul.f32.gmra.mxu0 %v991
        %v993 = vpop.f32.mrf.mxu0
        %v994 = vadd.f32 %v944, %v993
        %995 = vdwg.mxu0
        %996 = vmatpush.xpose.msra.mxu0 0.0
        %997 = vmatpush.xpose.msra.mxu0 0.0
        %998 = vmatpush.xpose.msra.mxu0 0.0
        %999 = vmatpush.xpose.msra.mxu0 0.0
        %1000 = vmatpush.xpose.msra.mxu0 0.0
        %1001 = vmatpush.xpose.msra.mxu0 0.0
        %1002 = vmatpush.xpose.msra.mxu0 0.0
        %1003 = vmatpush.xpose.msra.mxu0 0.0
        %1004 = vmatpush.xpose.msra.mxu0 0.0
        %1005 = vmatpush.xpose.msra.mxu0 0.0
        %1006 = vmatpush.xpose.msra.mxu0 0.0
        %1007 = vmatpush.xpose.msra.mxu0 0.0
        %1008 = vmatpush.xpose.msra.mxu0 0.0
        %1009 = vmatpush.xpose.msra.mxu0 0.0
        %v1010 = vand.u32 %v967, 4294901760
        %v1011 = vsub.f32 %v967, %v1010
        %v1012 = vand.u32 %v1011, 4294901760
        %v1013 = vsub.f32 %v1011, %v1012
        %v1014 = vand.u32 %v1013, 4294901760
        %1015 = vmatpush.xpose.msra.mxu0 %v1014
        %v1016 = vand.u32 %v964, 4294901760
        %v1017 = vsub.f32 %v964, %v1016
        %v1018 = vand.u32 %v1017, 4294901760
        %v1019 = vsub.f32 %v1017, %v1018
        %v1020 = vand.u32 %v1019, 4294901760
        %1021 = vmatpush.xpose.msra.mxu0 %v1020
        %v1022 = vand.u32 %v961, 4294901760
        %1023 = vmatmul.f32.gmra.mxu0 %v1022
        %v1024 = vpop.f32.mrf.mxu0
        %v1025 = vadd.f32 %v994, %v1024
        %1026 = vdwg.mxu0
        %1027 = vmatpush.xpose.msra.mxu0 0.0
        %1028 = vmatpush.xpose.msra.mxu0 0.0
        %1029 = vmatpush.xpose.msra.mxu0 0.0
        %1030 = vmatpush.xpose.msra.mxu0 0.0
        %1031 = vmatpush.xpose.msra.mxu0 0.0
        %1032 = vmatpush.xpose.msra.mxu0 0.0
        %1033 = vmatpush.xpose.msra.mxu0 0.0
        %1034 = vmatpush.xpose.msra.mxu0 0.0
        %1035 = vmatpush.xpose.msra.mxu0 0.0
        %1036 = vmatpush.xpose.msra.mxu0 0.0
        %1037 = vmatpush.xpose.msra.mxu0 0.0
        %1038 = vmatpush.xpose.msra.mxu0 0.0
        %1039 = vmatpush.xpose.msra.mxu0 0.0
        %1040 = vmatpush.xpose.msra.mxu0 0.0
        %v1041 = vand.u32 %v967, 4294901760
        %v1042 = vsub.f32 %v967, %v1041
        %1043 = vmatpush.xpose.msra.mxu0 %v1042
        %v1044 = vand.u32 %v964, 4294901760
        %v1045 = vsub.f32 %v964, %v1044
        %1046 = vmatpush.xpose.msra.mxu0 %v1045
        %v1047 = vand.u32 %v961, 4294901760
        %v1048 = vsub.f32 %v961, %v1047
        %1049 = vmatmul.f32.gmra.mxu0 %v1048
        %v1050 = vpop.f32.mrf.mxu0
        %v1051 = vadd.f32 %v1025, %v1050
        %1052 = vdwg.mxu0
        %1053 = vmatpush.xpose.msra.mxu0 0.0
        %1054 = vmatpush.xpose.msra.mxu0 0.0
        %1055 = vmatpush.xpose.msra.mxu0 0.0
        %1056 = vmatpush.xpose.msra.mxu0 0.0
        %1057 = vmatpush.xpose.msra.mxu0 0.0
        %1058 = vmatpush.xpose.msra.mxu0 0.0
        %1059 = vmatpush.xpose.msra.mxu0 0.0
        %1060 = vmatpush.xpose.msra.mxu0 0.0
        %1061 = vmatpush.xpose.msra.mxu0 0.0
        %1062 = vmatpush.xpose.msra.mxu0 0.0
        %1063 = vmatpush.xpose.msra.mxu0 0.0
        %1064 = vmatpush.xpose.msra.mxu0 0.0
        %1065 = vmatpush.xpose.msra.mxu0 0.0
        %1066 = vmatpush.xpose.msra.mxu0 0.0
        %v1067 = vand.u32 %v967, 4294901760
        %1068 = vmatpush.xpose.msra.mxu0 %v1067
        %v1069 = vand.u32 %v964, 4294901760
        %1070 = vmatpush.xpose.msra.mxu0 %v1069
        %v1071 = vand.u32 %v961, 4294901760
        %v1072 = vsub.f32 %v961, %v1071
        %v1073 = vand.u32 %v1072, 4294901760
        %1074 = vmatmul.f32.gmra.mxu0 %v1073
        %v1075 = vpop.f32.mrf.mxu0
        %v1076 = vadd.f32 %v1051, %v1075
        %1077 = vdwg.mxu0
        %1078 = vmatpush.xpose.msra.mxu0 0.0
        %1079 = vmatpush.xpose.msra.mxu0 0.0
        %1080 = vmatpush.xpose.msra.mxu0 0.0
        %1081 = vmatpush.xpose.msra.mxu0 0.0
        %1082 = vmatpush.xpose.msra.mxu0 0.0
        %1083 = vmatpush.xpose.msra.mxu0 0.0
        %1084 = vmatpush.xpose.msra.mxu0 0.0
        %1085 = vmatpush.xpose.msra.mxu0 0.0
        %1086 = vmatpush.xpose.msra.mxu0 0.0
        %1087 = vmatpush.xpose.msra.mxu0 0.0
        %1088 = vmatpush.xpose.msra.mxu0 0.0
        %1089 = vmatpush.xpose.msra.mxu0 0.0
        %1090 = vmatpush.xpose.msra.mxu0 0.0
        %1091 = vmatpush.xpose.msra.mxu0 0.0
        %v1092 = vand.u32 %v967, 4294901760
        %v1093 = vsub.f32 %v967, %v1092
        %v1094 = vand.u32 %v1093, 4294901760
        %1095 = vmatpush.xpose.msra.mxu0 %v1094
        %v1096 = vand.u32 %v964, 4294901760
        %v1097 = vsub.f32 %v964, %v1096
        %v1098 = vand.u32 %v1097, 4294901760
        %1099 = vmatpush.xpose.msra.mxu0 %v1098
        %v1100 = vand.u32 %v961, 4294901760
        %1101 = vmatmul.f32.gmra.mxu0 %v1100
        %v1102 = vpop.f32.mrf.mxu0
        %v1103 = vadd.f32 %v1076, %v1102
        %1104 = vdwg.mxu0
        %1105 = vmatpush.xpose.msra.mxu0 0.0
        %1106 = vmatpush.xpose.msra.mxu0 0.0
        %1107 = vmatpush.xpose.msra.mxu0 0.0
        %1108 = vmatpush.xpose.msra.mxu0 0.0
        %1109 = vmatpush.xpose.msra.mxu0 0.0
        %1110 = vmatpush.xpose.msra.mxu0 0.0
        %1111 = vmatpush.xpose.msra.mxu0 0.0
        %1112 = vmatpush.xpose.msra.mxu0 0.0
        %1113 = vmatpush.xpose.msra.mxu0 0.0
        %1114 = vmatpush.xpose.msra.mxu0 0.0
        %1115 = vmatpush.xpose.msra.mxu0 0.0
        %1116 = vmatpush.xpose.msra.mxu0 0.0
        %1117 = vmatpush.xpose.msra.mxu0 0.0
        %1118 = vmatpush.xpose.msra.mxu0 0.0
        %v1119 = vand.u32 %v967, 4294901760
        %1120 = vmatpush.xpose.msra.mxu0 %v1119
        %v1121 = vand.u32 %v964, 4294901760
        %1122 = vmatpush.xpose.msra.mxu0 %v1121
        %v1123 = vand.u32 %v961, 4294901760
        %1124 = vmatmul.f32.gmra.mxu0 %v1123
        %v1125 = vpop.f32.mrf.mxu0
        %v1126 = vadd.f32 %v1103, %v1125
        %1127 = vdwg.mxu0
        %v1129 = vsel %vm486, %v905, 0
        %v1132 = vsel %vm486, %v467, 0
        %v1135 = vsel %vm486, %v468, 0
        %1137 = vmatpush.xpose.msra.mxu0 0.0
        %1138 = vmatpush.xpose.msra.mxu0 0.0
        %1139 = vmatpush.xpose.msra.mxu0 0.0
        %1140 = vmatpush.xpose.msra.mxu0 0.0
        %1141 = vmatpush.xpose.msra.mxu0 0.0
        %1142 = vmatpush.xpose.msra.mxu0 0.0
        %1143 = vmatpush.xpose.msra.mxu0 0.0
        %1144 = vmatpush.xpose.msra.mxu0 0.0
        %1145 = vmatpush.xpose.msra.mxu0 0.0
        %1146 = vmatpush.xpose.msra.mxu0 0.0
        %1147 = vmatpush.xpose.msra.mxu0 0.0
        %1148 = vmatpush.xpose.msra.mxu0 0.0
        %1149 = vmatpush.xpose.msra.mxu0 0.0
        %1150 = vmatpush.xpose.msra.mxu0 0.0
        %v1151 = vand.u32 %v1135, 4294901760
        %1152 = vmatpush.xpose.msra.mxu0 %v1151
        %v1153 = vand.u32 %v1132, 4294901760
        %1154 = vmatpush.xpose.msra.mxu0 %v1153
        %v1155 = vand.u32 %v1129, 4294901760
        %v1156 = vsub.f32 %v1129, %v1155
        %v1157 = vand.u32 %v1156, 4294901760
        %v1158 = vsub.f32 %v1156, %v1157
        %v1159 = vand.u32 %v1158, 4294901760
        %1160 = vmatmul.f32.gmra.mxu0 %v1159
        %v1161 = vpop.f32.mrf.mxu0
        %v1162 = vadd.f32 %v945, %v1161
        %1163 = vdwg.mxu0
        %1164 = vmatpush.xpose.msra.mxu0 0.0
        %1165 = vmatpush.xpose.msra.mxu0 0.0
        %1166 = vmatpush.xpose.msra.mxu0 0.0
        %1167 = vmatpush.xpose.msra.mxu0 0.0
        %1168 = vmatpush.xpose.msra.mxu0 0.0
        %1169 = vmatpush.xpose.msra.mxu0 0.0
        %1170 = vmatpush.xpose.msra.mxu0 0.0
        %1171 = vmatpush.xpose.msra.mxu0 0.0
        %1172 = vmatpush.xpose.msra.mxu0 0.0
        %1173 = vmatpush.xpose.msra.mxu0 0.0
        %1174 = vmatpush.xpose.msra.mxu0 0.0
        %1175 = vmatpush.xpose.msra.mxu0 0.0
        %1176 = vmatpush.xpose.msra.mxu0 0.0
        %1177 = vmatpush.xpose.msra.mxu0 0.0
        %v1178 = vand.u32 %v1135, 4294901760
        %v1179 = vsub.f32 %v1135, %v1178
        %v1180 = vand.u32 %v1179, 4294901760
        %v1181 = vsub.f32 %v1179, %v1180
        %v1182 = vand.u32 %v1181, 4294901760
        %1183 = vmatpush.xpose.msra.mxu0 %v1182
        %v1184 = vand.u32 %v1132, 4294901760
        %v1185 = vsub.f32 %v1132, %v1184
        %v1186 = vand.u32 %v1185, 4294901760
        %v1187 = vsub.f32 %v1185, %v1186
        %v1188 = vand.u32 %v1187, 4294901760
        %1189 = vmatpush.xpose.msra.mxu0 %v1188
        %v1190 = vand.u32 %v1129, 4294901760
        %1191 = vmatmul.f32.gmra.mxu0 %v1190
        %v1192 = vpop.f32.mrf.mxu0
        %v1193 = vadd.f32 %v1162, %v1192
        %1194 = vdwg.mxu0
        %1195 = vmatpush.xpose.msra.mxu0 0.0
        %1196 = vmatpush.xpose.msra.mxu0 0.0
        %1197 = vmatpush.xpose.msra.mxu0 0.0
        %1198 = vmatpush.xpose.msra.mxu0 0.0
        %1199 = vmatpush.xpose.msra.mxu0 0.0
        %1200 = vmatpush.xpose.msra.mxu0 0.0
        %1201 = vmatpush.xpose.msra.mxu0 0.0
        %1202 = vmatpush.xpose.msra.mxu0 0.0
        %1203 = vmatpush.xpose.msra.mxu0 0.0
        %1204 = vmatpush.xpose.msra.mxu0 0.0
        %1205 = vmatpush.xpose.msra.mxu0 0.0
        %1206 = vmatpush.xpose.msra.mxu0 0.0
        %1207 = vmatpush.xpose.msra.mxu0 0.0
        %1208 = vmatpush.xpose.msra.mxu0 0.0
        %v1209 = vand.u32 %v1135, 4294901760
        %v1210 = vsub.f32 %v1135, %v1209
        %1211 = vmatpush.xpose.msra.mxu0 %v1210
        %v1212 = vand.u32 %v1132, 4294901760
        %v1213 = vsub.f32 %v1132, %v1212
        %1214 = vmatpush.xpose.msra.mxu0 %v1213
        %v1215 = vand.u32 %v1129, 4294901760
        %v1216 = vsub.f32 %v1129, %v1215
        %1217 = vmatmul.f32.gmra.mxu0 %v1216
        %v1218 = vpop.f32.mrf.mxu0
        %v1219 = vadd.f32 %v1193, %v1218
        %1220 = vdwg.mxu0
        %1221 = vmatpush.xpose.msra.mxu0 0.0
        %1222 = vmatpush.xpose.msra.mxu0 0.0
        %1223 = vmatpush.xpose.msra.mxu0 0.0
        %1224 = vmatpush.xpose.msra.mxu0 0.0
        %1225 = vmatpush.xpose.msra.mxu0 0.0
        %1226 = vmatpush.xpose.msra.mxu0 0.0
        %1227 = vmatpush.xpose.msra.mxu0 0.0
        %1228 = vmatpush.xpose.msra.mxu0 0.0
        %1229 = vmatpush.xpose.msra.mxu0 0.0
        %1230 = vmatpush.xpose.msra.mxu0 0.0
        %1231 = vmatpush.xpose.msra.mxu0 0.0
        %1232 = vmatpush.xpose.msra.mxu0 0.0
        %1233 = vmatpush.xpose.msra.mxu0 0.0
        %1234 = vmatpush.xpose.msra.mxu0 0.0
        %v1235 = vand.u32 %v1135, 4294901760
        %1236 = vmatpush.xpose.msra.mxu0 %v1235
        %v1237 = vand.u32 %v1132, 4294901760
        %1238 = vmatpush.xpose.msra.mxu0 %v1237
        %v1239 = vand.u32 %v1129, 4294901760
        %v1240 = vsub.f32 %v1129, %v1239
        %v1241 = vand.u32 %v1240, 4294901760
        %1242 = vmatmul.f32.gmra.mxu0 %v1241
        %v1243 = vpop.f32.mrf.mxu0
        %v1244 = vadd.f32 %v1219, %v1243
        %1245 = vdwg.mxu0
        %1246 = vmatpush.xpose.msra.mxu0 0.0
        %1247 = vmatpush.xpose.msra.mxu0 0.0
        %1248 = vmatpush.xpose.msra.mxu0 0.0
        %1249 = vmatpush.xpose.msra.mxu0 0.0
        %1250 = vmatpush.xpose.msra.mxu0 0.0
        %1251 = vmatpush.xpose.msra.mxu0 0.0
        %1252 = vmatpush.xpose.msra.mxu0 0.0
        %1253 = vmatpush.xpose.msra.mxu0 0.0
        %1254 = vmatpush.xpose.msra.mxu0 0.0
        %1255 = vmatpush.xpose.msra.mxu0 0.0
        %1256 = vmatpush.xpose.msra.mxu0 0.0
        %1257 = vmatpush.xpose.msra.mxu0 0.0
        %1258 = vmatpush.xpose.msra.mxu0 0.0
        %1259 = vmatpush.xpose.msra.mxu0 0.0
        %v1260 = vand.u32 %v1135, 4294901760
        %v1261 = vsub.f32 %v1135, %v1260
        %v1262 = vand.u32 %v1261, 4294901760
        %1263 = vmatpush.xpose.msra.mxu0 %v1262
        %v1264 = vand.u32 %v1132, 4294901760
        %v1265 = vsub.f32 %v1132, %v1264
        %v1266 = vand.u32 %v1265, 4294901760
        %1267 = vmatpush.xpose.msra.mxu0 %v1266
        %v1268 = vand.u32 %v1129, 4294901760
        %1269 = vmatmul.f32.gmra.mxu0 %v1268
        %v1270 = vpop.f32.mrf.mxu0
        %v1271 = vadd.f32 %v1244, %v1270
        %1272 = vdwg.mxu0
        %1273 = vmatpush.xpose.msra.mxu0 0.0
        %1274 = vmatpush.xpose.msra.mxu0 0.0
        %1275 = vmatpush.xpose.msra.mxu0 0.0
        %1276 = vmatpush.xpose.msra.mxu0 0.0
        %1277 = vmatpush.xpose.msra.mxu0 0.0
        %1278 = vmatpush.xpose.msra.mxu0 0.0
        %1279 = vmatpush.xpose.msra.mxu0 0.0
        %1280 = vmatpush.xpose.msra.mxu0 0.0
        %1281 = vmatpush.xpose.msra.mxu0 0.0
        %1282 = vmatpush.xpose.msra.mxu0 0.0
        %1283 = vmatpush.xpose.msra.mxu0 0.0
        %1284 = vmatpush.xpose.msra.mxu0 0.0
        %1285 = vmatpush.xpose.msra.mxu0 0.0
        %1286 = vmatpush.xpose.msra.mxu0 0.0
        %v1287 = vand.u32 %v1135, 4294901760
        %1288 = vmatpush.xpose.msra.mxu0 %v1287
        %v1289 = vand.u32 %v1132, 4294901760
        %1290 = vmatpush.xpose.msra.mxu0 %v1289
        %v1291 = vand.u32 %v1129, 4294901760
        %1292 = vmatmul.f32.gmra.mxu0 %v1291
        %v1293 = vpop.f32.mrf.mxu0
        %v1294 = vadd.f32 %v1271, %v1293
        %1295 = vdwg.mxu0
        %v1297 = vsel %vm486, %v906, 0
        %v1300 = vsel %vm486, %v469, 0
        %v1303 = vsel %vm486, %v470, 0
        %1305 = vmatpush.xpose.msra.mxu0 0.0
        %1306 = vmatpush.xpose.msra.mxu0 0.0
        %1307 = vmatpush.xpose.msra.mxu0 0.0
        %1308 = vmatpush.xpose.msra.mxu0 0.0
        %1309 = vmatpush.xpose.msra.mxu0 0.0
        %1310 = vmatpush.xpose.msra.mxu0 0.0
        %1311 = vmatpush.xpose.msra.mxu0 0.0
        %1312 = vmatpush.xpose.msra.mxu0 0.0
        %1313 = vmatpush.xpose.msra.mxu0 0.0
        %1314 = vmatpush.xpose.msra.mxu0 0.0
        %1315 = vmatpush.xpose.msra.mxu0 0.0
        %1316 = vmatpush.xpose.msra.mxu0 0.0
        %1317 = vmatpush.xpose.msra.mxu0 0.0
        %1318 = vmatpush.xpose.msra.mxu0 0.0
        %v1319 = vand.u32 %v1303, 4294901760
        %1320 = vmatpush.xpose.msra.mxu0 %v1319
        %v1321 = vand.u32 %v1300, 4294901760
        %1322 = vmatpush.xpose.msra.mxu0 %v1321
        %v1323 = vand.u32 %v1297, 4294901760
        %v1324 = vsub.f32 %v1297, %v1323
        %v1325 = vand.u32 %v1324, 4294901760
        %v1326 = vsub.f32 %v1324, %v1325
        %v1327 = vand.u32 %v1326, 4294901760
        %1328 = vmatmul.f32.gmra.mxu0 %v1327
        %v1329 = vpop.f32.mrf.mxu0
        %v1330 = vadd.f32 %v946, %v1329
        %1331 = vdwg.mxu0
        %1332 = vmatpush.xpose.msra.mxu0 0.0
        %1333 = vmatpush.xpose.msra.mxu0 0.0
        %1334 = vmatpush.xpose.msra.mxu0 0.0
        %1335 = vmatpush.xpose.msra.mxu0 0.0
        %1336 = vmatpush.xpose.msra.mxu0 0.0
        %1337 = vmatpush.xpose.msra.mxu0 0.0
        %1338 = vmatpush.xpose.msra.mxu0 0.0
        %1339 = vmatpush.xpose.msra.mxu0 0.0
        %1340 = vmatpush.xpose.msra.mxu0 0.0
        %1341 = vmatpush.xpose.msra.mxu0 0.0
        %1342 = vmatpush.xpose.msra.mxu0 0.0
        %1343 = vmatpush.xpose.msra.mxu0 0.0
        %1344 = vmatpush.xpose.msra.mxu0 0.0
        %1345 = vmatpush.xpose.msra.mxu0 0.0
        %v1346 = vand.u32 %v1303, 4294901760
        %v1347 = vsub.f32 %v1303, %v1346
        %v1348 = vand.u32 %v1347, 4294901760
        %v1349 = vsub.f32 %v1347, %v1348
        %v1350 = vand.u32 %v1349, 4294901760
        %1351 = vmatpush.xpose.msra.mxu0 %v1350
        %v1352 = vand.u32 %v1300, 4294901760
        %v1353 = vsub.f32 %v1300, %v1352
        %v1354 = vand.u32 %v1353, 4294901760
        %v1355 = vsub.f32 %v1353, %v1354
        %v1356 = vand.u32 %v1355, 4294901760
        %1357 = vmatpush.xpose.msra.mxu0 %v1356
        %v1358 = vand.u32 %v1297, 4294901760
        %1359 = vmatmul.f32.gmra.mxu0 %v1358
        %v1360 = vpop.f32.mrf.mxu0
        %v1361 = vadd.f32 %v1330, %v1360
        %1362 = vdwg.mxu0
        %1363 = vmatpush.xpose.msra.mxu0 0.0
        %1364 = vmatpush.xpose.msra.mxu0 0.0
        %1365 = vmatpush.xpose.msra.mxu0 0.0
        %1366 = vmatpush.xpose.msra.mxu0 0.0
        %1367 = vmatpush.xpose.msra.mxu0 0.0
        %1368 = vmatpush.xpose.msra.mxu0 0.0
        %1369 = vmatpush.xpose.msra.mxu0 0.0
        %1370 = vmatpush.xpose.msra.mxu0 0.0
        %1371 = vmatpush.xpose.msra.mxu0 0.0
        %1372 = vmatpush.xpose.msra.mxu0 0.0
        %1373 = vmatpush.xpose.msra.mxu0 0.0
        %1374 = vmatpush.xpose.msra.mxu0 0.0
        %1375 = vmatpush.xpose.msra.mxu0 0.0
        %1376 = vmatpush.xpose.msra.mxu0 0.0
        %v1377 = vand.u32 %v1303, 4294901760
        %v1378 = vsub.f32 %v1303, %v1377
        %1379 = vmatpush.xpose.msra.mxu0 %v1378
        %v1380 = vand.u32 %v1300, 4294901760
        %v1381 = vsub.f32 %v1300, %v1380
        %1382 = vmatpush.xpose.msra.mxu0 %v1381
        %v1383 = vand.u32 %v1297, 4294901760
        %v1384 = vsub.f32 %v1297, %v1383
        %1385 = vmatmul.f32.gmra.mxu0 %v1384
        %v1386 = vpop.f32.mrf.mxu0
        %v1387 = vadd.f32 %v1361, %v1386
        %1388 = vdwg.mxu0
        %1389 = vmatpush.xpose.msra.mxu0 0.0
        %1390 = vmatpush.xpose.msra.mxu0 0.0
        %1391 = vmatpush.xpose.msra.mxu0 0.0
        %1392 = vmatpush.xpose.msra.mxu0 0.0
        %1393 = vmatpush.xpose.msra.mxu0 0.0
        %1394 = vmatpush.xpose.msra.mxu0 0.0
        %1395 = vmatpush.xpose.msra.mxu0 0.0
        %1396 = vmatpush.xpose.msra.mxu0 0.0
        %1397 = vmatpush.xpose.msra.mxu0 0.0
        %1398 = vmatpush.xpose.msra.mxu0 0.0
        %1399 = vmatpush.xpose.msra.mxu0 0.0
        %1400 = vmatpush.xpose.msra.mxu0 0.0
        %1401 = vmatpush.xpose.msra.mxu0 0.0
        %1402 = vmatpush.xpose.msra.mxu0 0.0
        %v1403 = vand.u32 %v1303, 4294901760
        %1404 = vmatpush.xpose.msra.mxu0 %v1403
        %v1405 = vand.u32 %v1300, 4294901760
        %1406 = vmatpush.xpose.msra.mxu0 %v1405
        %v1407 = vand.u32 %v1297, 4294901760
        %v1408 = vsub.f32 %v1297, %v1407
        %v1409 = vand.u32 %v1408, 4294901760
        %1410 = vmatmul.f32.gmra.mxu0 %v1409
        %v1411 = vpop.f32.mrf.mxu0
        %v1412 = vadd.f32 %v1387, %v1411
        %1413 = vdwg.mxu0
        %1414 = vmatpush.xpose.msra.mxu0 0.0
        %1415 = vmatpush.xpose.msra.mxu0 0.0
        %1416 = vmatpush.xpose.msra.mxu0 0.0
        %1417 = vmatpush.xpose.msra.mxu0 0.0
        %1418 = vmatpush.xpose.msra.mxu0 0.0
        %1419 = vmatpush.xpose.msra.mxu0 0.0
        %1420 = vmatpush.xpose.msra.mxu0 0.0
        %1421 = vmatpush.xpose.msra.mxu0 0.0
        %1422 = vmatpush.xpose.msra.mxu0 0.0
        %1423 = vmatpush.xpose.msra.mxu0 0.0
        %1424 = vmatpush.xpose.msra.mxu0 0.0
        %1425 = vmatpush.xpose.msra.mxu0 0.0
        %1426 = vmatpush.xpose.msra.mxu0 0.0
        %1427 = vmatpush.xpose.msra.mxu0 0.0
        %v1428 = vand.u32 %v1303, 4294901760
        %v1429 = vsub.f32 %v1303, %v1428
        %v1430 = vand.u32 %v1429, 4294901760
        %1431 = vmatpush.xpose.msra.mxu0 %v1430
        %v1432 = vand.u32 %v1300, 4294901760
        %v1433 = vsub.f32 %v1300, %v1432
        %v1434 = vand.u32 %v1433, 4294901760
        %1435 = vmatpush.xpose.msra.mxu0 %v1434
        %v1436 = vand.u32 %v1297, 4294901760
        %1437 = vmatmul.f32.gmra.mxu0 %v1436
        %v1438 = vpop.f32.mrf.mxu0
        %v1439 = vadd.f32 %v1412, %v1438
        %1440 = vdwg.mxu0
        %1441 = vmatpush.xpose.msra.mxu0 0.0
        %1442 = vmatpush.xpose.msra.mxu0 0.0
        %1443 = vmatpush.xpose.msra.mxu0 0.0
        %1444 = vmatpush.xpose.msra.mxu0 0.0
        %1445 = vmatpush.xpose.msra.mxu0 0.0
        %1446 = vmatpush.xpose.msra.mxu0 0.0
        %1447 = vmatpush.xpose.msra.mxu0 0.0
        %1448 = vmatpush.xpose.msra.mxu0 0.0
        %1449 = vmatpush.xpose.msra.mxu0 0.0
        %1450 = vmatpush.xpose.msra.mxu0 0.0
        %1451 = vmatpush.xpose.msra.mxu0 0.0
        %1452 = vmatpush.xpose.msra.mxu0 0.0
        %1453 = vmatpush.xpose.msra.mxu0 0.0
        %1454 = vmatpush.xpose.msra.mxu0 0.0
        %v1455 = vand.u32 %v1303, 4294901760
        %1456 = vmatpush.xpose.msra.mxu0 %v1455
        %v1457 = vand.u32 %v1300, 4294901760
        %1458 = vmatpush.xpose.msra.mxu0 %v1457
        %v1459 = vand.u32 %v1297, 4294901760
        %1460 = vmatmul.f32.gmra.mxu0 %v1459
        %v1461 = vpop.f32.mrf.mxu0
        %v1462 = vadd.f32 %v1439, %v1461
        %1463 = vdwg.mxu0
        %v1465 = vsel %vm486, %v907, 0
        %v1468 = vsel %vm486, %v471, 0
        %v1471 = vsel %vm486, %v472, 0
        %1473 = vmatpush.xpose.msra.mxu0 0.0
        %1474 = vmatpush.xpose.msra.mxu0 0.0
        %1475 = vmatpush.xpose.msra.mxu0 0.0
        %1476 = vmatpush.xpose.msra.mxu0 0.0
        %1477 = vmatpush.xpose.msra.mxu0 0.0
        %1478 = vmatpush.xpose.msra.mxu0 0.0
        %1479 = vmatpush.xpose.msra.mxu0 0.0
        %1480 = vmatpush.xpose.msra.mxu0 0.0
        %1481 = vmatpush.xpose.msra.mxu0 0.0
        %1482 = vmatpush.xpose.msra.mxu0 0.0
        %1483 = vmatpush.xpose.msra.mxu0 0.0
        %1484 = vmatpush.xpose.msra.mxu0 0.0
        %1485 = vmatpush.xpose.msra.mxu0 0.0
        %1486 = vmatpush.xpose.msra.mxu0 0.0
        %v1487 = vand.u32 %v1471, 4294901760
        %1488 = vmatpush.xpose.msra.mxu0 %v1487
        %v1489 = vand.u32 %v1468, 4294901760
        %1490 = vmatpush.xpose.msra.mxu0 %v1489
        %v1491 = vand.u32 %v1465, 4294901760
        %v1492 = vsub.f32 %v1465, %v1491
        %v1493 = vand.u32 %v1492, 4294901760
        %v1494 = vsub.f32 %v1492, %v1493
        %v1495 = vand.u32 %v1494, 4294901760
        %1496 = vmatmul.f32.gmra.mxu0 %v1495
        %v1497 = vpop.f32.mrf.mxu0
        %v1498 = vadd.f32 %v947, %v1497
        %1499 = vdwg.mxu0
        %1500 = vmatpush.xpose.msra.mxu0 0.0
        %1501 = vmatpush.xpose.msra.mxu0 0.0
        %1502 = vmatpush.xpose.msra.mxu0 0.0
        %1503 = vmatpush.xpose.msra.mxu0 0.0
        %1504 = vmatpush.xpose.msra.mxu0 0.0
        %1505 = vmatpush.xpose.msra.mxu0 0.0
        %1506 = vmatpush.xpose.msra.mxu0 0.0
        %1507 = vmatpush.xpose.msra.mxu0 0.0
        %1508 = vmatpush.xpose.msra.mxu0 0.0
        %1509 = vmatpush.xpose.msra.mxu0 0.0
        %1510 = vmatpush.xpose.msra.mxu0 0.0
        %1511 = vmatpush.xpose.msra.mxu0 0.0
        %1512 = vmatpush.xpose.msra.mxu0 0.0
        %1513 = vmatpush.xpose.msra.mxu0 0.0
        %v1514 = vand.u32 %v1471, 4294901760
        %v1515 = vsub.f32 %v1471, %v1514
        %v1516 = vand.u32 %v1515, 4294901760
        %v1517 = vsub.f32 %v1515, %v1516
        %v1518 = vand.u32 %v1517, 4294901760
        %1519 = vmatpush.xpose.msra.mxu0 %v1518
        %v1520 = vand.u32 %v1468, 4294901760
        %v1521 = vsub.f32 %v1468, %v1520
        %v1522 = vand.u32 %v1521, 4294901760
        %v1523 = vsub.f32 %v1521, %v1522
        %v1524 = vand.u32 %v1523, 4294901760
        %1525 = vmatpush.xpose.msra.mxu0 %v1524
        %v1526 = vand.u32 %v1465, 4294901760
        %1527 = vmatmul.f32.gmra.mxu0 %v1526
        %v1528 = vpop.f32.mrf.mxu0
        %v1529 = vadd.f32 %v1498, %v1528
        %1530 = vdwg.mxu0
        %1531 = vmatpush.xpose.msra.mxu0 0.0
        %1532 = vmatpush.xpose.msra.mxu0 0.0
        %1533 = vmatpush.xpose.msra.mxu0 0.0
        %1534 = vmatpush.xpose.msra.mxu0 0.0
        %1535 = vmatpush.xpose.msra.mxu0 0.0
        %1536 = vmatpush.xpose.msra.mxu0 0.0
        %1537 = vmatpush.xpose.msra.mxu0 0.0
        %1538 = vmatpush.xpose.msra.mxu0 0.0
        %1539 = vmatpush.xpose.msra.mxu0 0.0
        %1540 = vmatpush.xpose.msra.mxu0 0.0
        %1541 = vmatpush.xpose.msra.mxu0 0.0
        %1542 = vmatpush.xpose.msra.mxu0 0.0
        %1543 = vmatpush.xpose.msra.mxu0 0.0
        %1544 = vmatpush.xpose.msra.mxu0 0.0
        %v1545 = vand.u32 %v1471, 4294901760
        %v1546 = vsub.f32 %v1471, %v1545
        %1547 = vmatpush.xpose.msra.mxu0 %v1546
        %v1548 = vand.u32 %v1468, 4294901760
        %v1549 = vsub.f32 %v1468, %v1548
        %1550 = vmatpush.xpose.msra.mxu0 %v1549
        %v1551 = vand.u32 %v1465, 4294901760
        %v1552 = vsub.f32 %v1465, %v1551
        %1553 = vmatmul.f32.gmra.mxu0 %v1552
        %v1554 = vpop.f32.mrf.mxu0
        %v1555 = vadd.f32 %v1529, %v1554
        %1556 = vdwg.mxu0
        %1557 = vmatpush.xpose.msra.mxu0 0.0
        %1558 = vmatpush.xpose.msra.mxu0 0.0
        %1559 = vmatpush.xpose.msra.mxu0 0.0
        %1560 = vmatpush.xpose.msra.mxu0 0.0
        %1561 = vmatpush.xpose.msra.mxu0 0.0
        %1562 = vmatpush.xpose.msra.mxu0 0.0
        %1563 = vmatpush.xpose.msra.mxu0 0.0
        %1564 = vmatpush.xpose.msra.mxu0 0.0
        %1565 = vmatpush.xpose.msra.mxu0 0.0
        %1566 = vmatpush.xpose.msra.mxu0 0.0
        %1567 = vmatpush.xpose.msra.mxu0 0.0
        %1568 = vmatpush.xpose.msra.mxu0 0.0
        %1569 = vmatpush.xpose.msra.mxu0 0.0
        %1570 = vmatpush.xpose.msra.mxu0 0.0
        %v1571 = vand.u32 %v1471, 4294901760
        %1572 = vmatpush.xpose.msra.mxu0 %v1571
        %v1573 = vand.u32 %v1468, 4294901760
        %1574 = vmatpush.xpose.msra.mxu0 %v1573
        %v1575 = vand.u32 %v1465, 4294901760
        %v1576 = vsub.f32 %v1465, %v1575
        %v1577 = vand.u32 %v1576, 4294901760
        %1578 = vmatmul.f32.gmra.mxu0 %v1577
        %v1579 = vpop.f32.mrf.mxu0
        %v1580 = vadd.f32 %v1555, %v1579
        %1581 = vdwg.mxu0
        %1582 = vmatpush.xpose.msra.mxu0 0.0
        %1583 = vmatpush.xpose.msra.mxu0 0.0
        %1584 = vmatpush.xpose.msra.mxu0 0.0
        %1585 = vmatpush.xpose.msra.mxu0 0.0
        %1586 = vmatpush.xpose.msra.mxu0 0.0
        %1587 = vmatpush.xpose.msra.mxu0 0.0
        %1588 = vmatpush.xpose.msra.mxu0 0.0
        %1589 = vmatpush.xpose.msra.mxu0 0.0
        %1590 = vmatpush.xpose.msra.mxu0 0.0
        %1591 = vmatpush.xpose.msra.mxu0 0.0
        %1592 = vmatpush.xpose.msra.mxu0 0.0
        %1593 = vmatpush.xpose.msra.mxu0 0.0
        %1594 = vmatpush.xpose.msra.mxu0 0.0
        %1595 = vmatpush.xpose.msra.mxu0 0.0
        %v1596 = vand.u32 %v1471, 4294901760
        %v1597 = vsub.f32 %v1471, %v1596
        %v1598 = vand.u32 %v1597, 4294901760
        %1599 = vmatpush.xpose.msra.mxu0 %v1598
        %v1600 = vand.u32 %v1468, 4294901760
        %v1601 = vsub.f32 %v1468, %v1600
        %v1602 = vand.u32 %v1601, 4294901760
        %1603 = vmatpush.xpose.msra.mxu0 %v1602
        %v1604 = vand.u32 %v1465, 4294901760
        %1605 = vmatmul.f32.gmra.mxu0 %v1604
        %v1606 = vpop.f32.mrf.mxu0
        %v1607 = vadd.f32 %v1580, %v1606
        %1608 = vdwg.mxu0
        %1609 = vmatpush.xpose.msra.mxu0 0.0
        %1610 = vmatpush.xpose.msra.mxu0 0.0
        %1611 = vmatpush.xpose.msra.mxu0 0.0
        %1612 = vmatpush.xpose.msra.mxu0 0.0
        %1613 = vmatpush.xpose.msra.mxu0 0.0
        %1614 = vmatpush.xpose.msra.mxu0 0.0
        %1615 = vmatpush.xpose.msra.mxu0 0.0
        %1616 = vmatpush.xpose.msra.mxu0 0.0
        %1617 = vmatpush.xpose.msra.mxu0 0.0
        %1618 = vmatpush.xpose.msra.mxu0 0.0
        %1619 = vmatpush.xpose.msra.mxu0 0.0
        %1620 = vmatpush.xpose.msra.mxu0 0.0
        %1621 = vmatpush.xpose.msra.mxu0 0.0
        %1622 = vmatpush.xpose.msra.mxu0 0.0
        %v1623 = vand.u32 %v1471, 4294901760
        %1624 = vmatpush.xpose.msra.mxu0 %v1623
        %v1625 = vand.u32 %v1468, 4294901760
        %1626 = vmatpush.xpose.msra.mxu0 %v1625
        %v1627 = vand.u32 %v1465, 4294901760
        %1628 = vmatmul.f32.gmra.mxu0 %v1627
        %v1629 = vpop.f32.mrf.mxu0
        %v1630 = vadd.f32 %v1607, %v1629
        %1631 = vdwg.mxu0
        %v1633 = vsel %vm486, %v908, 0
        %v1636 = vsel %vm486, %v473, 0
        %v1639 = vsel %vm486, %v474, 0
        %1641 = vmatpush.xpose.msra.mxu0 0.0
        %1642 = vmatpush.xpose.msra.mxu0 0.0
        %1643 = vmatpush.xpose.msra.mxu0 0.0
        %1644 = vmatpush.xpose.msra.mxu0 0.0
        %1645 = vmatpush.xpose.msra.mxu0 0.0
        %1646 = vmatpush.xpose.msra.mxu0 0.0
        %1647 = vmatpush.xpose.msra.mxu0 0.0
        %1648 = vmatpush.xpose.msra.mxu0 0.0
        %1649 = vmatpush.xpose.msra.mxu0 0.0
        %1650 = vmatpush.xpose.msra.mxu0 0.0
        %1651 = vmatpush.xpose.msra.mxu0 0.0
        %1652 = vmatpush.xpose.msra.mxu0 0.0
        %1653 = vmatpush.xpose.msra.mxu0 0.0
        %1654 = vmatpush.xpose.msra.mxu0 0.0
        %v1655 = vand.u32 %v1639, 4294901760
        %1656 = vmatpush.xpose.msra.mxu0 %v1655
        %v1657 = vand.u32 %v1636, 4294901760
        %1658 = vmatpush.xpose.msra.mxu0 %v1657
        %v1659 = vand.u32 %v1633, 4294901760
        %v1660 = vsub.f32 %v1633, %v1659
        %v1661 = vand.u32 %v1660, 4294901760
        %v1662 = vsub.f32 %v1660, %v1661
        %v1663 = vand.u32 %v1662, 4294901760
        %1664 = vmatmul.f32.gmra.mxu0 %v1663
        %v1665 = vpop.f32.mrf.mxu0
        %v1666 = vadd.f32 %v948, %v1665
        %1667 = vdwg.mxu0
        %1668 = vmatpush.xpose.msra.mxu0 0.0
        %1669 = vmatpush.xpose.msra.mxu0 0.0
        %1670 = vmatpush.xpose.msra.mxu0 0.0
        %1671 = vmatpush.xpose.msra.mxu0 0.0
        %1672 = vmatpush.xpose.msra.mxu0 0.0
        %1673 = vmatpush.xpose.msra.mxu0 0.0
        %1674 = vmatpush.xpose.msra.mxu0 0.0
        %1675 = vmatpush.xpose.msra.mxu0 0.0
        %1676 = vmatpush.xpose.msra.mxu0 0.0
        %1677 = vmatpush.xpose.msra.mxu0 0.0
        %1678 = vmatpush.xpose.msra.mxu0 0.0
        %1679 = vmatpush.xpose.msra.mxu0 0.0
        %1680 = vmatpush.xpose.msra.mxu0 0.0
        %1681 = vmatpush.xpose.msra.mxu0 0.0
        %v1682 = vand.u32 %v1639, 4294901760
        %v1683 = vsub.f32 %v1639, %v1682
        %v1684 = vand.u32 %v1683, 4294901760
        %v1685 = vsub.f32 %v1683, %v1684
        %v1686 = vand.u32 %v1685, 4294901760
        %1687 = vmatpush.xpose.msra.mxu0 %v1686
        %v1688 = vand.u32 %v1636, 4294901760
        %v1689 = vsub.f32 %v1636, %v1688
        %v1690 = vand.u32 %v1689, 4294901760
        %v1691 = vsub.f32 %v1689, %v1690
        %v1692 = vand.u32 %v1691, 4294901760
        %1693 = vmatpush.xpose.msra.mxu0 %v1692
        %v1694 = vand.u32 %v1633, 4294901760
        %1695 = vmatmul.f32.gmra.mxu0 %v1694
        %v1696 = vpop.f32.mrf.mxu0
        %v1697 = vadd.f32 %v1666, %v1696
        %1698 = vdwg.mxu0
        %1699 = vmatpush.xpose.msra.mxu0 0.0
        %1700 = vmatpush.xpose.msra.mxu0 0.0
        %1701 = vmatpush.xpose.msra.mxu0 0.0
        %1702 = vmatpush.xpose.msra.mxu0 0.0
        %1703 = vmatpush.xpose.msra.mxu0 0.0
        %1704 = vmatpush.xpose.msra.mxu0 0.0
        %1705 = vmatpush.xpose.msra.mxu0 0.0
        %1706 = vmatpush.xpose.msra.mxu0 0.0
        %1707 = vmatpush.xpose.msra.mxu0 0.0
        %1708 = vmatpush.xpose.msra.mxu0 0.0
        %1709 = vmatpush.xpose.msra.mxu0 0.0
        %1710 = vmatpush.xpose.msra.mxu0 0.0
        %1711 = vmatpush.xpose.msra.mxu0 0.0
        %1712 = vmatpush.xpose.msra.mxu0 0.0
        %v1713 = vand.u32 %v1639, 4294901760
        %v1714 = vsub.f32 %v1639, %v1713
        %1715 = vmatpush.xpose.msra.mxu0 %v1714
        %v1716 = vand.u32 %v1636, 4294901760
        %v1717 = vsub.f32 %v1636, %v1716
        %1718 = vmatpush.xpose.msra.mxu0 %v1717
        %v1719 = vand.u32 %v1633, 4294901760
        %v1720 = vsub.f32 %v1633, %v1719
        %1721 = vmatmul.f32.gmra.mxu0 %v1720
        %v1722 = vpop.f32.mrf.mxu0
        %v1723 = vadd.f32 %v1697, %v1722
        %1724 = vdwg.mxu0
        %1725 = vmatpush.xpose.msra.mxu0 0.0
        %1726 = vmatpush.xpose.msra.mxu0 0.0
        %1727 = vmatpush.xpose.msra.mxu0 0.0
        %1728 = vmatpush.xpose.msra.mxu0 0.0
        %1729 = vmatpush.xpose.msra.mxu0 0.0
        %1730 = vmatpush.xpose.msra.mxu0 0.0
        %1731 = vmatpush.xpose.msra.mxu0 0.0
        %1732 = vmatpush.xpose.msra.mxu0 0.0
        %1733 = vmatpush.xpose.msra.mxu0 0.0
        %1734 = vmatpush.xpose.msra.mxu0 0.0
        %1735 = vmatpush.xpose.msra.mxu0 0.0
        %1736 = vmatpush.xpose.msra.mxu0 0.0
        %1737 = vmatpush.xpose.msra.mxu0 0.0
        %1738 = vmatpush.xpose.msra.mxu0 0.0
        %v1739 = vand.u32 %v1639, 4294901760
        %1740 = vmatpush.xpose.msra.mxu0 %v1739
        %v1741 = vand.u32 %v1636, 4294901760
        %1742 = vmatpush.xpose.msra.mxu0 %v1741
        %v1743 = vand.u32 %v1633, 4294901760
        %v1744 = vsub.f32 %v1633, %v1743
        %v1745 = vand.u32 %v1744, 4294901760
        %1746 = vmatmul.f32.gmra.mxu0 %v1745
        %v1747 = vpop.f32.mrf.mxu0
        %v1748 = vadd.f32 %v1723, %v1747
        %1749 = vdwg.mxu0
        %1750 = vmatpush.xpose.msra.mxu0 0.0
        %1751 = vmatpush.xpose.msra.mxu0 0.0
        %1752 = vmatpush.xpose.msra.mxu0 0.0
        %1753 = vmatpush.xpose.msra.mxu0 0.0
        %1754 = vmatpush.xpose.msra.mxu0 0.0
        %1755 = vmatpush.xpose.msra.mxu0 0.0
        %1756 = vmatpush.xpose.msra.mxu0 0.0
        %1757 = vmatpush.xpose.msra.mxu0 0.0
        %1758 = vmatpush.xpose.msra.mxu0 0.0
        %1759 = vmatpush.xpose.msra.mxu0 0.0
        %1760 = vmatpush.xpose.msra.mxu0 0.0
        %1761 = vmatpush.xpose.msra.mxu0 0.0
        %1762 = vmatpush.xpose.msra.mxu0 0.0
        %1763 = vmatpush.xpose.msra.mxu0 0.0
        %v1764 = vand.u32 %v1639, 4294901760
        %v1765 = vsub.f32 %v1639, %v1764
        %v1766 = vand.u32 %v1765, 4294901760
        %1767 = vmatpush.xpose.msra.mxu0 %v1766
        %v1768 = vand.u32 %v1636, 4294901760
        %v1769 = vsub.f32 %v1636, %v1768
        %v1770 = vand.u32 %v1769, 4294901760
        %1771 = vmatpush.xpose.msra.mxu0 %v1770
        %v1772 = vand.u32 %v1633, 4294901760
        %1773 = vmatmul.f32.gmra.mxu0 %v1772
        %v1774 = vpop.f32.mrf.mxu0
        %v1775 = vadd.f32 %v1748, %v1774
        %1776 = vdwg.mxu0
        %1777 = vmatpush.xpose.msra.mxu0 0.0
        %1778 = vmatpush.xpose.msra.mxu0 0.0
        %1779 = vmatpush.xpose.msra.mxu0 0.0
        %1780 = vmatpush.xpose.msra.mxu0 0.0
        %1781 = vmatpush.xpose.msra.mxu0 0.0
        %1782 = vmatpush.xpose.msra.mxu0 0.0
        %1783 = vmatpush.xpose.msra.mxu0 0.0
        %1784 = vmatpush.xpose.msra.mxu0 0.0
        %1785 = vmatpush.xpose.msra.mxu0 0.0
        %1786 = vmatpush.xpose.msra.mxu0 0.0
        %1787 = vmatpush.xpose.msra.mxu0 0.0
        %1788 = vmatpush.xpose.msra.mxu0 0.0
        %1789 = vmatpush.xpose.msra.mxu0 0.0
        %1790 = vmatpush.xpose.msra.mxu0 0.0
        %v1791 = vand.u32 %v1639, 4294901760
        %1792 = vmatpush.xpose.msra.mxu0 %v1791
        %v1793 = vand.u32 %v1636, 4294901760
        %1794 = vmatpush.xpose.msra.mxu0 %v1793
        %v1795 = vand.u32 %v1633, 4294901760
        %1796 = vmatmul.f32.gmra.mxu0 %v1795
        %v1797 = vpop.f32.mrf.mxu0
        %v1798 = vadd.f32 %v1775, %v1797
        %1799 = vdwg.mxu0
        %v1801 = vsel %vm486, %v909, 0
        %v1804 = vsel %vm486, %v475, 0
        %v1807 = vsel %vm486, %v476, 0
        %1809 = vmatpush.xpose.msra.mxu0 0.0
        %1810 = vmatpush.xpose.msra.mxu0 0.0
        %1811 = vmatpush.xpose.msra.mxu0 0.0
        %1812 = vmatpush.xpose.msra.mxu0 0.0
        %1813 = vmatpush.xpose.msra.mxu0 0.0
        %1814 = vmatpush.xpose.msra.mxu0 0.0
        %1815 = vmatpush.xpose.msra.mxu0 0.0
        %1816 = vmatpush.xpose.msra.mxu0 0.0
        %1817 = vmatpush.xpose.msra.mxu0 0.0
        %1818 = vmatpush.xpose.msra.mxu0 0.0
        %1819 = vmatpush.xpose.msra.mxu0 0.0
        %1820 = vmatpush.xpose.msra.mxu0 0.0
        %1821 = vmatpush.xpose.msra.mxu0 0.0
        %1822 = vmatpush.xpose.msra.mxu0 0.0
        %v1823 = vand.u32 %v1807, 4294901760
        %1824 = vmatpush.xpose.msra.mxu0 %v1823
        %v1825 = vand.u32 %v1804, 4294901760
        %1826 = vmatpush.xpose.msra.mxu0 %v1825
        %v1827 = vand.u32 %v1801, 4294901760
        %v1828 = vsub.f32 %v1801, %v1827
        %v1829 = vand.u32 %v1828, 4294901760
        %v1830 = vsub.f32 %v1828, %v1829
        %v1831 = vand.u32 %v1830, 4294901760
        %1832 = vmatmul.f32.gmra.mxu0 %v1831
        %v1833 = vpop.f32.mrf.mxu0
        %v1834 = vadd.f32 %v949, %v1833
        %1835 = vdwg.mxu0
        %1836 = vmatpush.xpose.msra.mxu0 0.0
        %1837 = vmatpush.xpose.msra.mxu0 0.0
        %1838 = vmatpush.xpose.msra.mxu0 0.0
        %1839 = vmatpush.xpose.msra.mxu0 0.0
        %1840 = vmatpush.xpose.msra.mxu0 0.0
        %1841 = vmatpush.xpose.msra.mxu0 0.0
        %1842 = vmatpush.xpose.msra.mxu0 0.0
        %1843 = vmatpush.xpose.msra.mxu0 0.0
        %1844 = vmatpush.xpose.msra.mxu0 0.0
        %1845 = vmatpush.xpose.msra.mxu0 0.0
        %1846 = vmatpush.xpose.msra.mxu0 0.0
        %1847 = vmatpush.xpose.msra.mxu0 0.0
        %1848 = vmatpush.xpose.msra.mxu0 0.0
        %1849 = vmatpush.xpose.msra.mxu0 0.0
        %v1850 = vand.u32 %v1807, 4294901760
        %v1851 = vsub.f32 %v1807, %v1850
        %v1852 = vand.u32 %v1851, 4294901760
        %v1853 = vsub.f32 %v1851, %v1852
        %v1854 = vand.u32 %v1853, 4294901760
        %1855 = vmatpush.xpose.msra.mxu0 %v1854
        %v1856 = vand.u32 %v1804, 4294901760
        %v1857 = vsub.f32 %v1804, %v1856
        %v1858 = vand.u32 %v1857, 4294901760
        %v1859 = vsub.f32 %v1857, %v1858
        %v1860 = vand.u32 %v1859, 4294901760
        %1861 = vmatpush.xpose.msra.mxu0 %v1860
        %v1862 = vand.u32 %v1801, 4294901760
        %1863 = vmatmul.f32.gmra.mxu0 %v1862
        %v1864 = vpop.f32.mrf.mxu0
        %v1865 = vadd.f32 %v1834, %v1864
        %1866 = vdwg.mxu0
        %1867 = vmatpush.xpose.msra.mxu0 0.0
        %1868 = vmatpush.xpose.msra.mxu0 0.0
        %1869 = vmatpush.xpose.msra.mxu0 0.0
        %1870 = vmatpush.xpose.msra.mxu0 0.0
        %1871 = vmatpush.xpose.msra.mxu0 0.0
        %1872 = vmatpush.xpose.msra.mxu0 0.0
        %1873 = vmatpush.xpose.msra.mxu0 0.0
        %1874 = vmatpush.xpose.msra.mxu0 0.0
        %1875 = vmatpush.xpose.msra.mxu0 0.0
        %1876 = vmatpush.xpose.msra.mxu0 0.0
        %1877 = vmatpush.xpose.msra.mxu0 0.0
        %1878 = vmatpush.xpose.msra.mxu0 0.0
        %1879 = vmatpush.xpose.msra.mxu0 0.0
        %1880 = vmatpush.xpose.msra.mxu0 0.0
        %v1881 = vand.u32 %v1807, 4294901760
        %v1882 = vsub.f32 %v1807, %v1881
        %1883 = vmatpush.xpose.msra.mxu0 %v1882
        %v1884 = vand.u32 %v1804, 4294901760
        %v1885 = vsub.f32 %v1804, %v1884
        %1886 = vmatpush.xpose.msra.mxu0 %v1885
        %v1887 = vand.u32 %v1801, 4294901760
        %v1888 = vsub.f32 %v1801, %v1887
        %1889 = vmatmul.f32.gmra.mxu0 %v1888
        %v1890 = vpop.f32.mrf.mxu0
        %v1891 = vadd.f32 %v1865, %v1890
        %1892 = vdwg.mxu0
        %1893 = vmatpush.xpose.msra.mxu0 0.0
        %1894 = vmatpush.xpose.msra.mxu0 0.0
        %1895 = vmatpush.xpose.msra.mxu0 0.0
        %1896 = vmatpush.xpose.msra.mxu0 0.0
        %1897 = vmatpush.xpose.msra.mxu0 0.0
        %1898 = vmatpush.xpose.msra.mxu0 0.0
        %1899 = vmatpush.xpose.msra.mxu0 0.0
        %1900 = vmatpush.xpose.msra.mxu0 0.0
        %1901 = vmatpush.xpose.msra.mxu0 0.0
        %1902 = vmatpush.xpose.msra.mxu0 0.0
        %1903 = vmatpush.xpose.msra.mxu0 0.0
        %1904 = vmatpush.xpose.msra.mxu0 0.0
        %1905 = vmatpush.xpose.msra.mxu0 0.0
        %1906 = vmatpush.xpose.msra.mxu0 0.0
        %v1907 = vand.u32 %v1807, 4294901760
        %1908 = vmatpush.xpose.msra.mxu0 %v1907
        %v1909 = vand.u32 %v1804, 4294901760
        %1910 = vmatpush.xpose.msra.mxu0 %v1909
        %v1911 = vand.u32 %v1801, 4294901760
        %v1912 = vsub.f32 %v1801, %v1911
        %v1913 = vand.u32 %v1912, 4294901760
        %1914 = vmatmul.f32.gmra.mxu0 %v1913
        %v1915 = vpop.f32.mrf.mxu0
        %v1916 = vadd.f32 %v1891, %v1915
        %1917 = vdwg.mxu0
        %1918 = vmatpush.xpose.msra.mxu0 0.0
        %1919 = vmatpush.xpose.msra.mxu0 0.0
        %1920 = vmatpush.xpose.msra.mxu0 0.0
        %1921 = vmatpush.xpose.msra.mxu0 0.0
        %1922 = vmatpush.xpose.msra.mxu0 0.0
        %1923 = vmatpush.xpose.msra.mxu0 0.0
        %1924 = vmatpush.xpose.msra.mxu0 0.0
        %1925 = vmatpush.xpose.msra.mxu0 0.0
        %1926 = vmatpush.xpose.msra.mxu0 0.0
        %1927 = vmatpush.xpose.msra.mxu0 0.0
        %1928 = vmatpush.xpose.msra.mxu0 0.0
        %1929 = vmatpush.xpose.msra.mxu0 0.0
        %1930 = vmatpush.xpose.msra.mxu0 0.0
        %1931 = vmatpush.xpose.msra.mxu0 0.0
        %v1932 = vand.u32 %v1807, 4294901760
        %v1933 = vsub.f32 %v1807, %v1932
        %v1934 = vand.u32 %v1933, 4294901760
        %1935 = vmatpush.xpose.msra.mxu0 %v1934
        %v1936 = vand.u32 %v1804, 4294901760
        %v1937 = vsub.f32 %v1804, %v1936
        %v1938 = vand.u32 %v1937, 4294901760
        %1939 = vmatpush.xpose.msra.mxu0 %v1938
        %v1940 = vand.u32 %v1801, 4294901760
        %1941 = vmatmul.f32.gmra.mxu0 %v1940
        %v1942 = vpop.f32.mrf.mxu0
        %v1943 = vadd.f32 %v1916, %v1942
        %1944 = vdwg.mxu0
        %1945 = vmatpush.xpose.msra.mxu0 0.0
        %1946 = vmatpush.xpose.msra.mxu0 0.0
        %1947 = vmatpush.xpose.msra.mxu0 0.0
        %1948 = vmatpush.xpose.msra.mxu0 0.0
        %1949 = vmatpush.xpose.msra.mxu0 0.0
        %1950 = vmatpush.xpose.msra.mxu0 0.0
        %1951 = vmatpush.xpose.msra.mxu0 0.0
        %1952 = vmatpush.xpose.msra.mxu0 0.0
        %1953 = vmatpush.xpose.msra.mxu0 0.0
        %1954 = vmatpush.xpose.msra.mxu0 0.0
        %1955 = vmatpush.xpose.msra.mxu0 0.0
        %1956 = vmatpush.xpose.msra.mxu0 0.0
        %1957 = vmatpush.xpose.msra.mxu0 0.0
        %1958 = vmatpush.xpose.msra.mxu0 0.0
        %v1959 = vand.u32 %v1807, 4294901760
        %1960 = vmatpush.xpose.msra.mxu0 %v1959
        %v1961 = vand.u32 %v1804, 4294901760
        %1962 = vmatpush.xpose.msra.mxu0 %v1961
        %v1963 = vand.u32 %v1801, 4294901760
        %1964 = vmatmul.f32.gmra.mxu0 %v1963
        %v1965 = vpop.f32.mrf.mxu0
        %v1966 = vadd.f32 %v1943, %v1965
        %1967 = vdwg.mxu0
        %v1969 = vsel %vm486, %v910, 0
        %v1972 = vsel %vm486, %v477, 0
        %v1975 = vsel %vm486, %v478, 0
        %1977 = vmatpush.xpose.msra.mxu0 0.0
        %1978 = vmatpush.xpose.msra.mxu0 0.0
        %1979 = vmatpush.xpose.msra.mxu0 0.0
        %1980 = vmatpush.xpose.msra.mxu0 0.0
        %1981 = vmatpush.xpose.msra.mxu0 0.0
        %1982 = vmatpush.xpose.msra.mxu0 0.0
        %1983 = vmatpush.xpose.msra.mxu0 0.0
        %1984 = vmatpush.xpose.msra.mxu0 0.0
        %1985 = vmatpush.xpose.msra.mxu0 0.0
        %1986 = vmatpush.xpose.msra.mxu0 0.0
        %1987 = vmatpush.xpose.msra.mxu0 0.0
        %1988 = vmatpush.xpose.msra.mxu0 0.0
        %1989 = vmatpush.xpose.msra.mxu0 0.0
        %1990 = vmatpush.xpose.msra.mxu0 0.0
        %v1991 = vand.u32 %v1975, 4294901760
        %1992 = vmatpush.xpose.msra.mxu0 %v1991
        %v1993 = vand.u32 %v1972, 4294901760
        %1994 = vmatpush.xpose.msra.mxu0 %v1993
        %v1995 = vand.u32 %v1969, 4294901760
        %v1996 = vsub.f32 %v1969, %v1995
        %v1997 = vand.u32 %v1996, 4294901760
        %v1998 = vsub.f32 %v1996, %v1997
        %v1999 = vand.u32 %v1998, 4294901760
        %2000 = vmatmul.f32.gmra.mxu0 %v1999
        %v2001 = vpop.f32.mrf.mxu0
        %v2002 = vadd.f32 %v950, %v2001
        %2003 = vdwg.mxu0
        %2004 = vmatpush.xpose.msra.mxu0 0.0
        %2005 = vmatpush.xpose.msra.mxu0 0.0
        %2006 = vmatpush.xpose.msra.mxu0 0.0
        %2007 = vmatpush.xpose.msra.mxu0 0.0
        %2008 = vmatpush.xpose.msra.mxu0 0.0
        %2009 = vmatpush.xpose.msra.mxu0 0.0
        %2010 = vmatpush.xpose.msra.mxu0 0.0
        %2011 = vmatpush.xpose.msra.mxu0 0.0
        %2012 = vmatpush.xpose.msra.mxu0 0.0
        %2013 = vmatpush.xpose.msra.mxu0 0.0
        %2014 = vmatpush.xpose.msra.mxu0 0.0
        %2015 = vmatpush.xpose.msra.mxu0 0.0
        %2016 = vmatpush.xpose.msra.mxu0 0.0
        %2017 = vmatpush.xpose.msra.mxu0 0.0
        %v2018 = vand.u32 %v1975, 4294901760
        %v2019 = vsub.f32 %v1975, %v2018
        %v2020 = vand.u32 %v2019, 4294901760
        %v2021 = vsub.f32 %v2019, %v2020
        %v2022 = vand.u32 %v2021, 4294901760
        %2023 = vmatpush.xpose.msra.mxu0 %v2022
        %v2024 = vand.u32 %v1972, 4294901760
        %v2025 = vsub.f32 %v1972, %v2024
        %v2026 = vand.u32 %v2025, 4294901760
        %v2027 = vsub.f32 %v2025, %v2026
        %v2028 = vand.u32 %v2027, 4294901760
        %2029 = vmatpush.xpose.msra.mxu0 %v2028
        %v2030 = vand.u32 %v1969, 4294901760
        %2031 = vmatmul.f32.gmra.mxu0 %v2030
        %v2032 = vpop.f32.mrf.mxu0
        %v2033 = vadd.f32 %v2002, %v2032
        %2034 = vdwg.mxu0
        %2035 = vmatpush.xpose.msra.mxu0 0.0
        %2036 = vmatpush.xpose.msra.mxu0 0.0
        %2037 = vmatpush.xpose.msra.mxu0 0.0
        %2038 = vmatpush.xpose.msra.mxu0 0.0
        %2039 = vmatpush.xpose.msra.mxu0 0.0
        %2040 = vmatpush.xpose.msra.mxu0 0.0
        %2041 = vmatpush.xpose.msra.mxu0 0.0
        %2042 = vmatpush.xpose.msra.mxu0 0.0
        %2043 = vmatpush.xpose.msra.mxu0 0.0
        %2044 = vmatpush.xpose.msra.mxu0 0.0
        %2045 = vmatpush.xpose.msra.mxu0 0.0
        %2046 = vmatpush.xpose.msra.mxu0 0.0
        %2047 = vmatpush.xpose.msra.mxu0 0.0
        %2048 = vmatpush.xpose.msra.mxu0 0.0
        %v2049 = vand.u32 %v1975, 4294901760
        %v2050 = vsub.f32 %v1975, %v2049
        %2051 = vmatpush.xpose.msra.mxu0 %v2050
        %v2052 = vand.u32 %v1972, 4294901760
        %v2053 = vsub.f32 %v1972, %v2052
        %2054 = vmatpush.xpose.msra.mxu0 %v2053
        %v2055 = vand.u32 %v1969, 4294901760
        %v2056 = vsub.f32 %v1969, %v2055
        %2057 = vmatmul.f32.gmra.mxu0 %v2056
        %v2058 = vpop.f32.mrf.mxu0
        %v2059 = vadd.f32 %v2033, %v2058
        %2060 = vdwg.mxu0
        %2061 = vmatpush.xpose.msra.mxu0 0.0
        %2062 = vmatpush.xpose.msra.mxu0 0.0
        %2063 = vmatpush.xpose.msra.mxu0 0.0
        %2064 = vmatpush.xpose.msra.mxu0 0.0
        %2065 = vmatpush.xpose.msra.mxu0 0.0
        %2066 = vmatpush.xpose.msra.mxu0 0.0
        %2067 = vmatpush.xpose.msra.mxu0 0.0
        %2068 = vmatpush.xpose.msra.mxu0 0.0
        %2069 = vmatpush.xpose.msra.mxu0 0.0
        %2070 = vmatpush.xpose.msra.mxu0 0.0
        %2071 = vmatpush.xpose.msra.mxu0 0.0
        %2072 = vmatpush.xpose.msra.mxu0 0.0
        %2073 = vmatpush.xpose.msra.mxu0 0.0
        %2074 = vmatpush.xpose.msra.mxu0 0.0
        %v2075 = vand.u32 %v1975, 4294901760
        %2076 = vmatpush.xpose.msra.mxu0 %v2075
        %v2077 = vand.u32 %v1972, 4294901760
        %2078 = vmatpush.xpose.msra.mxu0 %v2077
        %v2079 = vand.u32 %v1969, 4294901760
        %v2080 = vsub.f32 %v1969, %v2079
        %v2081 = vand.u32 %v2080, 4294901760
        %2082 = vmatmul.f32.gmra.mxu0 %v2081
        %v2083 = vpop.f32.mrf.mxu0
        %v2084 = vadd.f32 %v2059, %v2083
        %2085 = vdwg.mxu0
        %2086 = vmatpush.xpose.msra.mxu0 0.0
        %2087 = vmatpush.xpose.msra.mxu0 0.0
        %2088 = vmatpush.xpose.msra.mxu0 0.0
        %2089 = vmatpush.xpose.msra.mxu0 0.0
        %2090 = vmatpush.xpose.msra.mxu0 0.0
        %2091 = vmatpush.xpose.msra.mxu0 0.0
        %2092 = vmatpush.xpose.msra.mxu0 0.0
        %2093 = vmatpush.xpose.msra.mxu0 0.0
        %2094 = vmatpush.xpose.msra.mxu0 0.0
        %2095 = vmatpush.xpose.msra.mxu0 0.0
        %2096 = vmatpush.xpose.msra.mxu0 0.0
        %2097 = vmatpush.xpose.msra.mxu0 0.0
        %2098 = vmatpush.xpose.msra.mxu0 0.0
        %2099 = vmatpush.xpose.msra.mxu0 0.0
        %v2100 = vand.u32 %v1975, 4294901760
        %v2101 = vsub.f32 %v1975, %v2100
        %v2102 = vand.u32 %v2101, 4294901760
        %2103 = vmatpush.xpose.msra.mxu0 %v2102
        %v2104 = vand.u32 %v1972, 4294901760
        %v2105 = vsub.f32 %v1972, %v2104
        %v2106 = vand.u32 %v2105, 4294901760
        %2107 = vmatpush.xpose.msra.mxu0 %v2106
        %v2108 = vand.u32 %v1969, 4294901760
        %2109 = vmatmul.f32.gmra.mxu0 %v2108
        %v2110 = vpop.f32.mrf.mxu0
        %v2111 = vadd.f32 %v2084, %v2110
        %2112 = vdwg.mxu0
        %2113 = vmatpush.xpose.msra.mxu0 0.0
        %2114 = vmatpush.xpose.msra.mxu0 0.0
        %2115 = vmatpush.xpose.msra.mxu0 0.0
        %2116 = vmatpush.xpose.msra.mxu0 0.0
        %2117 = vmatpush.xpose.msra.mxu0 0.0
        %2118 = vmatpush.xpose.msra.mxu0 0.0
        %2119 = vmatpush.xpose.msra.mxu0 0.0
        %2120 = vmatpush.xpose.msra.mxu0 0.0
        %2121 = vmatpush.xpose.msra.mxu0 0.0
        %2122 = vmatpush.xpose.msra.mxu0 0.0
        %2123 = vmatpush.xpose.msra.mxu0 0.0
        %2124 = vmatpush.xpose.msra.mxu0 0.0
        %2125 = vmatpush.xpose.msra.mxu0 0.0
        %2126 = vmatpush.xpose.msra.mxu0 0.0
        %v2127 = vand.u32 %v1975, 4294901760
        %2128 = vmatpush.xpose.msra.mxu0 %v2127
        %v2129 = vand.u32 %v1972, 4294901760
        %2130 = vmatpush.xpose.msra.mxu0 %v2129
        %v2131 = vand.u32 %v1969, 4294901760
        %2132 = vmatmul.f32.gmra.mxu0 %v2131
        %v2133 = vpop.f32.mrf.mxu0
        %v2134 = vadd.f32 %v2111, %v2133
        %2135 = vdwg.mxu0
        %v2137 = vsel %vm486, %v911, 0
        %v2140 = vsel %vm486, %v479, 0
        %v2143 = vsel %vm486, %v480, 0
        %2145 = vmatpush.xpose.msra.mxu0 0.0
        %2146 = vmatpush.xpose.msra.mxu0 0.0
        %2147 = vmatpush.xpose.msra.mxu0 0.0
        %2148 = vmatpush.xpose.msra.mxu0 0.0
        %2149 = vmatpush.xpose.msra.mxu0 0.0
        %2150 = vmatpush.xpose.msra.mxu0 0.0
        %2151 = vmatpush.xpose.msra.mxu0 0.0
        %2152 = vmatpush.xpose.msra.mxu0 0.0
        %2153 = vmatpush.xpose.msra.mxu0 0.0
        %2154 = vmatpush.xpose.msra.mxu0 0.0
        %2155 = vmatpush.xpose.msra.mxu0 0.0
        %2156 = vmatpush.xpose.msra.mxu0 0.0
        %2157 = vmatpush.xpose.msra.mxu0 0.0
        %2158 = vmatpush.xpose.msra.mxu0 0.0
        %v2159 = vand.u32 %v2143, 4294901760
        %2160 = vmatpush.xpose.msra.mxu0 %v2159
        %v2161 = vand.u32 %v2140, 4294901760
        %2162 = vmatpush.xpose.msra.mxu0 %v2161
        %v2163 = vand.u32 %v2137, 4294901760
        %v2164 = vsub.f32 %v2137, %v2163
        %v2165 = vand.u32 %v2164, 4294901760
        %v2166 = vsub.f32 %v2164, %v2165
        %v2167 = vand.u32 %v2166, 4294901760
        %2168 = vmatmul.f32.gmra.mxu0 %v2167
        %v2169 = vpop.f32.mrf.mxu0
        %v2170 = vadd.f32 %v951, %v2169
        %2171 = vdwg.mxu0
        %2172 = vmatpush.xpose.msra.mxu0 0.0
        %2173 = vmatpush.xpose.msra.mxu0 0.0
        %2174 = vmatpush.xpose.msra.mxu0 0.0
        %2175 = vmatpush.xpose.msra.mxu0 0.0
        %2176 = vmatpush.xpose.msra.mxu0 0.0
        %2177 = vmatpush.xpose.msra.mxu0 0.0
        %2178 = vmatpush.xpose.msra.mxu0 0.0
        %2179 = vmatpush.xpose.msra.mxu0 0.0
        %2180 = vmatpush.xpose.msra.mxu0 0.0
        %2181 = vmatpush.xpose.msra.mxu0 0.0
        %2182 = vmatpush.xpose.msra.mxu0 0.0
        %2183 = vmatpush.xpose.msra.mxu0 0.0
        %2184 = vmatpush.xpose.msra.mxu0 0.0
        %2185 = vmatpush.xpose.msra.mxu0 0.0
        %v2186 = vand.u32 %v2143, 4294901760
        %v2187 = vsub.f32 %v2143, %v2186
        %v2188 = vand.u32 %v2187, 4294901760
        %v2189 = vsub.f32 %v2187, %v2188
        %v2190 = vand.u32 %v2189, 4294901760
        %2191 = vmatpush.xpose.msra.mxu0 %v2190
        %v2192 = vand.u32 %v2140, 4294901760
        %v2193 = vsub.f32 %v2140, %v2192
        %v2194 = vand.u32 %v2193, 4294901760
        %v2195 = vsub.f32 %v2193, %v2194
        %v2196 = vand.u32 %v2195, 4294901760
        %2197 = vmatpush.xpose.msra.mxu0 %v2196
        %v2198 = vand.u32 %v2137, 4294901760
        %2199 = vmatmul.f32.gmra.mxu0 %v2198
        %v2200 = vpop.f32.mrf.mxu0
        %v2201 = vadd.f32 %v2170, %v2200
        %2202 = vdwg.mxu0
        %2203 = vmatpush.xpose.msra.mxu0 0.0
        %2204 = vmatpush.xpose.msra.mxu0 0.0
        %2205 = vmatpush.xpose.msra.mxu0 0.0
        %2206 = vmatpush.xpose.msra.mxu0 0.0
        %2207 = vmatpush.xpose.msra.mxu0 0.0
        %2208 = vmatpush.xpose.msra.mxu0 0.0
        %2209 = vmatpush.xpose.msra.mxu0 0.0
        %2210 = vmatpush.xpose.msra.mxu0 0.0
        %2211 = vmatpush.xpose.msra.mxu0 0.0
        %2212 = vmatpush.xpose.msra.mxu0 0.0
        %2213 = vmatpush.xpose.msra.mxu0 0.0
        %2214 = vmatpush.xpose.msra.mxu0 0.0
        %2215 = vmatpush.xpose.msra.mxu0 0.0
        %2216 = vmatpush.xpose.msra.mxu0 0.0
        %v2217 = vand.u32 %v2143, 4294901760
        %v2218 = vsub.f32 %v2143, %v2217
        %2219 = vmatpush.xpose.msra.mxu0 %v2218
        %v2220 = vand.u32 %v2140, 4294901760
        %v2221 = vsub.f32 %v2140, %v2220
        %2222 = vmatpush.xpose.msra.mxu0 %v2221
        %v2223 = vand.u32 %v2137, 4294901760
        %v2224 = vsub.f32 %v2137, %v2223
        %2225 = vmatmul.f32.gmra.mxu0 %v2224
        %v2226 = vpop.f32.mrf.mxu0
        %v2227 = vadd.f32 %v2201, %v2226
        %2228 = vdwg.mxu0
        %2229 = vmatpush.xpose.msra.mxu0 0.0
        %2230 = vmatpush.xpose.msra.mxu0 0.0
        %2231 = vmatpush.xpose.msra.mxu0 0.0
        %2232 = vmatpush.xpose.msra.mxu0 0.0
        %2233 = vmatpush.xpose.msra.mxu0 0.0
        %2234 = vmatpush.xpose.msra.mxu0 0.0
        %2235 = vmatpush.xpose.msra.mxu0 0.0
        %2236 = vmatpush.xpose.msra.mxu0 0.0
        %2237 = vmatpush.xpose.msra.mxu0 0.0
        %2238 = vmatpush.xpose.msra.mxu0 0.0
        %2239 = vmatpush.xpose.msra.mxu0 0.0
        %2240 = vmatpush.xpose.msra.mxu0 0.0
        %2241 = vmatpush.xpose.msra.mxu0 0.0
        %2242 = vmatpush.xpose.msra.mxu0 0.0
        %v2243 = vand.u32 %v2143, 4294901760
        %2244 = vmatpush.xpose.msra.mxu0 %v2243
        %v2245 = vand.u32 %v2140, 4294901760
        %2246 = vmatpush.xpose.msra.mxu0 %v2245
        %v2247 = vand.u32 %v2137, 4294901760
        %v2248 = vsub.f32 %v2137, %v2247
        %v2249 = vand.u32 %v2248, 4294901760
        %2250 = vmatmul.f32.gmra.mxu0 %v2249
        %v2251 = vpop.f32.mrf.mxu0
        %v2252 = vadd.f32 %v2227, %v2251
        %2253 = vdwg.mxu0
        %2254 = vmatpush.xpose.msra.mxu0 0.0
        %2255 = vmatpush.xpose.msra.mxu0 0.0
        %2256 = vmatpush.xpose.msra.mxu0 0.0
        %2257 = vmatpush.xpose.msra.mxu0 0.0
        %2258 = vmatpush.xpose.msra.mxu0 0.0
        %2259 = vmatpush.xpose.msra.mxu0 0.0
        %2260 = vmatpush.xpose.msra.mxu0 0.0
        %2261 = vmatpush.xpose.msra.mxu0 0.0
        %2262 = vmatpush.xpose.msra.mxu0 0.0
        %2263 = vmatpush.xpose.msra.mxu0 0.0
        %2264 = vmatpush.xpose.msra.mxu0 0.0
        %2265 = vmatpush.xpose.msra.mxu0 0.0
        %2266 = vmatpush.xpose.msra.mxu0 0.0
        %2267 = vmatpush.xpose.msra.mxu0 0.0
        %v2268 = vand.u32 %v2143, 4294901760
        %v2269 = vsub.f32 %v2143, %v2268
        %v2270 = vand.u32 %v2269, 4294901760
        %2271 = vmatpush.xpose.msra.mxu0 %v2270
        %v2272 = vand.u32 %v2140, 4294901760
        %v2273 = vsub.f32 %v2140, %v2272
        %v2274 = vand.u32 %v2273, 4294901760
        %2275 = vmatpush.xpose.msra.mxu0 %v2274
        %v2276 = vand.u32 %v2137, 4294901760
        %2277 = vmatmul.f32.gmra.mxu0 %v2276
        %v2278 = vpop.f32.mrf.mxu0
        %v2279 = vadd.f32 %v2252, %v2278
        %2280 = vdwg.mxu0
        %2281 = vmatpush.xpose.msra.mxu0 0.0
        %2282 = vmatpush.xpose.msra.mxu0 0.0
        %2283 = vmatpush.xpose.msra.mxu0 0.0
        %2284 = vmatpush.xpose.msra.mxu0 0.0
        %2285 = vmatpush.xpose.msra.mxu0 0.0
        %2286 = vmatpush.xpose.msra.mxu0 0.0
        %2287 = vmatpush.xpose.msra.mxu0 0.0
        %2288 = vmatpush.xpose.msra.mxu0 0.0
        %2289 = vmatpush.xpose.msra.mxu0 0.0
        %2290 = vmatpush.xpose.msra.mxu0 0.0
        %2291 = vmatpush.xpose.msra.mxu0 0.0
        %2292 = vmatpush.xpose.msra.mxu0 0.0
        %2293 = vmatpush.xpose.msra.mxu0 0.0
        %2294 = vmatpush.xpose.msra.mxu0 0.0
        %v2295 = vand.u32 %v2143, 4294901760
        %2296 = vmatpush.xpose.msra.mxu0 %v2295
        %v2297 = vand.u32 %v2140, 4294901760
        %2298 = vmatpush.xpose.msra.mxu0 %v2297
        %v2299 = vand.u32 %v2137, 4294901760
        %2300 = vmatmul.f32.gmra.mxu0 %v2299
        %v2301 = vpop.f32.mrf.mxu0
        %v2302 = vadd.f32 %v2279, %v2301
        %2303 = vdwg.mxu0
        %vm2304 = vcmask 123904
        %v2305 = vsel %vm2304, %v1126, -inf
        %2306 = vmax.xlane.f32.xlu0 %v2305
        %v2307 = vpop.xlane.xlu0 %2306
        %v2308 = vsel %vm2304, %v1294, -inf
        %2309 = vmax.xlane.f32.xlu0 %v2308
        %v2310 = vpop.xlane.xlu0 %2309
        %v2311 = vsel %vm2304, %v1462, -inf
        %2312 = vmax.xlane.f32.xlu0 %v2311
        %v2313 = vpop.xlane.xlu0 %2312
        %v2314 = vsel %vm2304, %v1630, -inf
        %2315 = vmax.xlane.f32.xlu0 %v2314
        %v2316 = vpop.xlane.xlu0 %2315
        %v2317 = vsel %vm2304, %v1798, -inf
        %2318 = vmax.xlane.f32.xlu0 %v2317
        %v2319 = vpop.xlane.xlu0 %2318
        %v2320 = vsel %vm2304, %v1966, -inf
        %2321 = vmax.xlane.f32.xlu0 %v2320
        %v2322 = vpop.xlane.xlu0 %2321
        %v2323 = vsel %vm2304, %v2134, -inf
        %2324 = vmax.xlane.f32.xlu0 %v2323
        %v2325 = vpop.xlane.xlu0 %2324
        %v2326 = vsel %vm2304, %v2302, -inf
        %2327 = vmax.xlane.f32.xlu0 %v2326
        %v2328 = vpop.xlane.xlu0 %2327
        %v2329 = vsub.f32 %v1126, %v2307
        %v2330 = vsub.f32 %v1294, %v2310
        %v2331 = vsub.f32 %v1462, %v2313
        %v2332 = vsub.f32 %v1630, %v2316
        %v2333 = vsub.f32 %v1798, %v2319
        %v2334 = vsub.f32 %v1966, %v2322
        %v2335 = vsub.f32 %v2134, %v2325
        %v2336 = vsub.f32 %v2302, %v2328
        %v2337 = vmul.f32 %v2329, 1.442695
        %v2338 = vpow.pop %v2337
        %v2339 = vmul.f32 %v2330, 1.442695
        %v2340 = vpow.pop %v2339
        %v2341 = vmul.f32 %v2331, 1.442695
        %v2342 = vpow.pop %v2341
        %v2343 = vmul.f32 %v2332, 1.442695
        %v2344 = vpow.pop %v2343
        %v2345 = vmul.f32 %v2333, 1.442695
        %v2346 = vpow.pop %v2345
        %v2347 = vmul.f32 %v2334, 1.442695
        %v2348 = vpow.pop %v2347
        %v2349 = vmul.f32 %v2335, 1.442695
        %v2350 = vpow.pop %v2349
        %v2351 = vmul.f32 %v2336, 1.442695
        %v2352 = vpow.pop %v2351
        %v2353 = vsel %vm2304, %v2338, 0.0
        %2354 = vadd.xlane.f32.xlu0 %v2353
        %v2355 = vpop.xlane.xlu0 %2354
        %v2356 = vsel %vm2304, %v2340, 0.0
        %2357 = vadd.xlane.f32.xlu0 %v2356
        %v2358 = vpop.xlane.xlu0 %2357
        %v2359 = vsel %vm2304, %v2342, 0.0
        %2360 = vadd.xlane.f32.xlu0 %v2359
        %v2361 = vpop.xlane.xlu0 %2360
        %v2362 = vsel %vm2304, %v2344, 0.0
        %2363 = vadd.xlane.f32.xlu0 %v2362
        %v2364 = vpop.xlane.xlu0 %2363
        %v2365 = vsel %vm2304, %v2346, 0.0
        %2366 = vadd.xlane.f32.xlu0 %v2365
        %v2367 = vpop.xlane.xlu0 %2366
        %v2368 = vsel %vm2304, %v2348, 0.0
        %2369 = vadd.xlane.f32.xlu0 %v2368
        %v2370 = vpop.xlane.xlu0 %2369
        %v2371 = vsel %vm2304, %v2350, 0.0
        %2372 = vadd.xlane.f32.xlu0 %v2371
        %v2373 = vpop.xlane.xlu0 %2372
        %v2374 = vsel %vm2304, %v2352, 0.0
        %2375 = vadd.xlane.f32.xlu0 %v2374
        %v2376 = vpop.xlane.xlu0 %2375
        %v2377 = vrcp.pop %v2355
        %v2378 = vmul.f32 %v2355, %v2377
        %v2379 = vsub.f32 1.0, %v2378
        %v2380 = vmul.f32 %v2377, %v2379
        %v2381 = vadd.f32 %v2377, %v2380
        %vm2382 = vweird.f32 %v2355
        %vm2383 = vweird.f32 %v2377
        %vm2384 = vmor %vm2382, %vm2383
        %v2385 = vsel %vm2384, %v2377, %v2381
        %v2386 = vand.u32 2147483647, %v2355
        %vm2387 = vcmp.eq.f32.partialorder %v2386, 8.507059e+37
        %v2388 = vand.u32 %v2355, 2147483648
        %v2389 = vor.u32 1.1754944e-38, %v2388
        %v2390 = vsel %vm2387, %v2389, %v2385
        %v2391 = vrcp.pop %v2358
        %v2392 = vmul.f32 %v2358, %v2391
        %v2393 = vsub.f32 1.0, %v2392
        %v2394 = vmul.f32 %v2391, %v2393
        %v2395 = vadd.f32 %v2391, %v2394
        %vm2396 = vweird.f32 %v2358
        %vm2397 = vweird.f32 %v2391
        %vm2398 = vmor %vm2396, %vm2397
        %v2399 = vsel %vm2398, %v2391, %v2395
        %v2400 = vand.u32 2147483647, %v2358
        %vm2401 = vcmp.eq.f32.partialorder %v2400, 8.507059e+37
        %v2402 = vand.u32 %v2358, 2147483648
        %v2403 = vor.u32 1.1754944e-38, %v2402
        %v2404 = vsel %vm2401, %v2403, %v2399
        %v2405 = vrcp.pop %v2361
        %v2406 = vmul.f32 %v2361, %v2405
        %v2407 = vsub.f32 1.0, %v2406
        %v2408 = vmul.f32 %v2405, %v2407
        %v2409 = vadd.f32 %v2405, %v2408
        %vm2410 = vweird.f32 %v2361
        %vm2411 = vweird.f32 %v2405
        %vm2412 = vmor %vm2410, %vm2411
        %v2413 = vsel %vm2412, %v2405, %v2409
        %v2414 = vand.u32 2147483647, %v2361
        %vm2415 = vcmp.eq.f32.partialorder %v2414, 8.507059e+37
        %v2416 = vand.u32 %v2361, 2147483648
        %v2417 = vor.u32 1.1754944e-38, %v2416
        %v2418 = vsel %vm2415, %v2417, %v2413
        %v2419 = vrcp.pop %v2364
        %v2420 = vmul.f32 %v2364, %v2419
        %v2421 = vsub.f32 1.0, %v2420
        %v2422 = vmul.f32 %v2419, %v2421
        %v2423 = vadd.f32 %v2419, %v2422
        %vm2424 = vweird.f32 %v2364
        %vm2425 = vweird.f32 %v2419
        %vm2426 = vmor %vm2424, %vm2425
        %v2427 = vsel %vm2426, %v2419, %v2423
        %v2428 = vand.u32 2147483647, %v2364
        %vm2429 = vcmp.eq.f32.partialorder %v2428, 8.507059e+37
        %v2430 = vand.u32 %v2364, 2147483648
        %v2431 = vor.u32 1.1754944e-38, %v2430
        %v2432 = vsel %vm2429, %v2431, %v2427
        %v2433 = vrcp.pop %v2367
        %v2434 = vmul.f32 %v2367, %v2433
        %v2435 = vsub.f32 1.0, %v2434
        %v2436 = vmul.f32 %v2433, %v2435
        %v2437 = vadd.f32 %v2433, %v2436
        %vm2438 = vweird.f32 %v2367
        %vm2439 = vweird.f32 %v2433
        %vm2440 = vmor %vm2438, %vm2439
        %v2441 = vsel %vm2440, %v2433, %v2437
        %v2442 = vand.u32 2147483647, %v2367
        %vm2443 = vcmp.eq.f32.partialorder %v2442, 8.507059e+37
        %v2444 = vand.u32 %v2367, 2147483648
        %v2445 = vor.u32 1.1754944e-38, %v2444
        %v2446 = vsel %vm2443, %v2445, %v2441
        %v2447 = vrcp.pop %v2370
        %v2448 = vmul.f32 %v2370, %v2447
        %v2449 = vsub.f32 1.0, %v2448
        %v2450 = vmul.f32 %v2447, %v2449
        %v2451 = vadd.f32 %v2447, %v2450
        %vm2452 = vweird.f32 %v2370
        %vm2453 = vweird.f32 %v2447
        %vm2454 = vmor %vm2452, %vm2453
        %v2455 = vsel %vm2454, %v2447, %v2451
        %v2456 = vand.u32 2147483647, %v2370
        %vm2457 = vcmp.eq.f32.partialorder %v2456, 8.507059e+37
        %v2458 = vand.u32 %v2370, 2147483648
        %v2459 = vor.u32 1.1754944e-38, %v2458
        %v2460 = vsel %vm2457, %v2459, %v2455
        %v2461 = vrcp.pop %v2373
        %v2462 = vmul.f32 %v2373, %v2461
        %v2463 = vsub.f32 1.0, %v2462
        %v2464 = vmul.f32 %v2461, %v2463
        %v2465 = vadd.f32 %v2461, %v2464
        %vm2466 = vweird.f32 %v2373
        %vm2467 = vweird.f32 %v2461
        %vm2468 = vmor %vm2466, %vm2467
        %v2469 = vsel %vm2468, %v2461, %v2465
        %v2470 = vand.u32 2147483647, %v2373
        %vm2471 = vcmp.eq.f32.partialorder %v2470, 8.507059e+37
        %v2472 = vand.u32 %v2373, 2147483648
        %v2473 = vor.u32 1.1754944e-38, %v2472
        %v2474 = vsel %vm2471, %v2473, %v2469
        %v2475 = vrcp.pop %v2376
        %v2476 = vmul.f32 %v2376, %v2475
        %v2477 = vsub.f32 1.0, %v2476
        %v2478 = vmul.f32 %v2475, %v2477
        %v2479 = vadd.f32 %v2475, %v2478
        %vm2480 = vweird.f32 %v2376
        %vm2481 = vweird.f32 %v2475
        %vm2482 = vmor %vm2480, %vm2481
        %v2483 = vsel %vm2482, %v2475, %v2479
        %v2484 = vand.u32 2147483647, %v2376
        %vm2485 = vcmp.eq.f32.partialorder %v2484, 8.507059e+37
        %v2486 = vand.u32 %v2376, 2147483648
        %v2487 = vor.u32 1.1754944e-38, %v2486
        %v2488 = vsel %vm2485, %v2487, %v2483
        %v2489 = vmul.f32 %v2338, %v2390
        %v2490 = vmul.f32 %v2340, %v2404
        %v2491 = vmul.f32 %v2342, %v2418
        %v2492 = vmul.f32 %v2344, %v2432
        %v2493 = vmul.f32 %v2346, %v2446
        %v2494 = vmul.f32 %v2348, %v2460
        %v2495 = vmul.f32 %v2350, %v2474
        %v2496 = vmul.f32 %v2352, %v2488
        %v2505 = vrot.slane %v1294, 7
        %vm2506 = vcmask 1041409
        %v2507 = vsel %vm2506, %v2505, %v1126
        %v2508 = vrot.slane %v1462, 6
        %vm2509 = vcmask 1042434
        %v2510 = vsel %vm2509, %v2508, %v2507
        %v2511 = vrot.slane %v1630, 5
        %vm2512 = vcmask 1043459
        %v2513 = vsel %vm2512, %v2511, %v2510
        %v2514 = vrot.slane %v1798, 4
        %vm2515 = vcmask 1044484
        %v2516 = vsel %vm2515, %v2514, %v2513
        %v2517 = vrot.slane %v1966, 3
        %vm2518 = vcmask 1045509
        %v2519 = vsel %vm2518, %v2517, %v2516
        %v2520 = vrot.slane %v2134, 2
        %vm2521 = vcmask 1046534
        %v2522 = vsel %vm2521, %v2520, %v2519
        %v2523 = vrot.slane %v2302, 1
        %vm2524 = vcmask 1047559
        %v2525 = vsel %vm2524, %v2523, %v2522
        %vm2527 = vcmask 130048
        %2528 = vst.msk [vmem:[%s455] sm:$0xff] %vm2527, %v2525
        %v2529 = vsel %vm2509, %v2505, %v1126
        %v2530 = vsel %vm2512, %v2508, %v2529
        %v2531 = vsel %vm2515, %v2511, %v2530
        %v2532 = vsel %vm2518, %v2514, %v2531
        %v2533 = vsel %vm2521, %v2517, %v2532
        %v2534 = vsel %vm2524, %v2520, %v2533
        %vm2537 = vcmask 130049
        %2538 = vst.msk [vmem:[%s462 - $0x1] sm:$0xfe] %vm2537, %v2534
        %vm2539 = vcmask 122880
        %2540 = vst.msk [vmem:[%s462 + $0x7] sm:$0x1] %vm2539, %v2523
        %v2549 = vrot.slane %v2490, 7
        %v2550 = vsel %vm2506, %v2549, %v2489
        %v2551 = vrot.slane %v2491, 6
        %v2552 = vsel %vm2509, %v2551, %v2550
        %v2553 = vrot.slane %v2492, 5
        %v2554 = vsel %vm2512, %v2553, %v2552
        %v2555 = vrot.slane %v2493, 4
        %v2556 = vsel %vm2515, %v2555, %v2554
        %v2557 = vrot.slane %v2494, 3
        %v2558 = vsel %vm2518, %v2557, %v2556
        %v2559 = vrot.slane %v2495, 2
        %v2560 = vsel %vm2521, %v2559, %v2558
        %v2561 = vrot.slane %v2496, 1
        %v2562 = vsel %vm2524, %v2561, %v2560
        %2564 = vst.msk [vmem:[%s441] sm:$0xff] %vm2527, %v2562
        %v2565 = vsel %vm2509, %v2549, %v2489
        %v2566 = vsel %vm2512, %v2551, %v2565
        %v2567 = vsel %vm2515, %v2553, %v2566
        %v2568 = vsel %vm2518, %v2555, %v2567
        %v2569 = vsel %vm2521, %v2557, %v2568
        %v2570 = vsel %vm2524, %v2559, %v2569
        %2573 = vst.msk [vmem:[%s448 - $0x1] sm:$0xfe] %vm2537, %v2570
        %2574 = vst.msk [vmem:[%s448 + $0x7] sm:$0x1] %vm2539, %v2561
        %s2575 = sand.u32 %s164, 1
        %s2576 = scalar_lea.sflag [#allocation4], %s2575
        %s2577 = sand.u32 %s164, 1
        %s2578 = smul.addr %s2577, 8
        %s2579 = scalar_lea.vmem [#allocation11], %s2578
        %s2580 = sand.u32 %s36, 1
        %s2581 = scalar_lea.sflag [#allocation13], %s2580
        %s2582 = sand.u32 %s190, 1
        %s2583 = smul.addr %s2582, 8
        %s2584 = scalar_lea.vmem [#allocation12], %s2583
        %s2585 = sand.u32 %s36, 1
        %s2586 = scalar_lea.sflag [#allocation13], %s2585
        %s2587 = sand.u32 %s216, 1
        %s2588 = smul.addr %s2587, 8
        %s2589 = scalar_lea.vmem [#allocation14], %s2588
        %s2590 = sand.u32 %s242, 1
        %s2591 = scalar_lea.sflag [#allocation16], %s2590
        %s2592 = sand.u32 %s242, 1
        %s2593 = smul.addr %s2592, 8
        %s2594 = scalar_lea.vmem [#allocation15], %s2593
        // Predicated region
        $region61: #{tpu_custom_call.1} parent=39 // pred_check
          %p2595 = pneg %p174
        $region62: #{tpu_custom_call.1} parent=39 // pred_check_branch
          %2597 = sbr.rel (%p2595) target = $region64
        $region63: #{tpu_custom_call.1} parent=39 // pred_region
          %2599 = vsyncadd %s2576, 0
          %s2600 = smul.addr %s36, 8
          %s2601 = scalar_lea.hbm %s5, %s2600
          %s2603 = sshll.u32 %s2579, 4
          %s2604 = int_to_ptr.vmem [resolvable:$true] %s2603
          %s2605 = sshll.u32 %s2601, 4
          %s2606 = int_to_ptr.hbm [resolvable:$true] %s2605
          %2608 = dma.vmem_to_hbm [thread:$0]  %s2604, 128, %s2606, %s2576
        $region64: #{tpu_custom_call.1} parent=39 // pred_fallthru
          _
        // Predicated region
        $region65: #{tpu_custom_call.1} parent=39 // pred_check
          %p2609 = pneg %p200
        $region66: #{tpu_custom_call.1} parent=39 // pred_check_branch
          %2611 = sbr.rel (%p2609) target = $region68
        $region67: #{tpu_custom_call.1} parent=39 // pred_region
          %2613 = vsyncadd %s2581, 0
          %s2614 = smul.addr %s36, 8
          %s2615 = scalar_lea.hbm %s6, %s2614
          %s2617 = sshll.u32 %s2584, 4
          %s2618 = int_to_ptr.vmem [resolvable:$true] %s2617
          %s2619 = sshll.u32 %s2615, 4
          %s2620 = int_to_ptr.hbm [resolvable:$true] %s2619
          %2622 = dma.vmem_to_hbm [thread:$0]  %s2618, 128, %s2620, %s2581
        $region68: #{tpu_custom_call.1} parent=39 // pred_fallthru
          _
        // Predicated region
        $region69: #{tpu_custom_call.1} parent=39 // pred_check
          %p2623 = pneg %p226
        $region70: #{tpu_custom_call.1} parent=39 // pred_check_branch
          %2625 = sbr.rel (%p2623) target = $region72
        $region71: #{tpu_custom_call.1} parent=39 // pred_region
          %2627 = vsyncadd %s2586, 0
          %s2628 = smul.addr %s36, 8
          %s2629 = scalar_lea.hbm %s7, %s2628
          %s2631 = sshll.u32 %s2589, 4
          %s2632 = int_to_ptr.vmem [resolvable:$true] %s2631
          %s2633 = sshll.u32 %s2629, 4
          %s2634 = int_to_ptr.hbm [resolvable:$true] %s2633
          %2636 = dma.vmem_to_hbm [thread:$0]  %s2632, 128, %s2634, %s2586
        $region72: #{tpu_custom_call.1} parent=39 // pred_fallthru
          _
        // Predicated region
        $region73: #{tpu_custom_call.1} parent=39 // pred_check
          %p2637 = pneg %p252
        $region74: #{tpu_custom_call.1} parent=39 // pred_check_branch
          %2639 = sbr.rel (%p2637) target = $region76
        $region75: #{tpu_custom_call.1} parent=39 // pred_region
          %2641 = vsyncadd %s2591, 0
          %s2642 = smul.addr %s36, 8
          %s2643 = scalar_lea.hbm %s8, %s2642
          %s2645 = sshll.u32 %s2594, 4
          %s2646 = int_to_ptr.vmem [resolvable:$true] %s2645
          %s2647 = sshll.u32 %s2643, 4
          %s2648 = int_to_ptr.hbm [resolvable:$true] %s2647
          %2650 = dma.vmem_to_hbm [thread:$0]  %s2646, 128, %s2648, %s2591
        $region76: #{tpu_custom_call.1} parent=39 // pred_fallthru
          _
      $region40: #{tpu_custom_call.1} parent=5 // pred_fallthru
        _
      %p2651 = scmp.le.s32.totalorder 2, %s31
      // Predicated region
      $region77: #{tpu_custom_call.1} parent=5 // pred_check
        %p2652 = pneg %p2651
      $region78: #{tpu_custom_call.1} parent=5 // pred_check_branch
        %2654 = sbr.rel (%p2652) target = $region80
      $region79: #{tpu_custom_call.1} parent=5 // pred_region
        %s2655 = ssub.s32 %s31, 2
        // Predicated region
        $region81: #{tpu_custom_call.1} parent=79 // pred_check
          %p2656 = pneg %p180
        $region82: #{tpu_custom_call.1} parent=79 // pred_check_branch
          %2658 = sbr.rel (%p2656) target = $region84
        $region83: #{tpu_custom_call.1} parent=79 // pred_region
          %s2659 = sand.u32 %s165, 1
          %s2660 = scalar_lea.sflag [#allocation4], %s2659
          %s2661 = sand.u32 %s165, 1
          %s2662 = smul.addr %s2661, 8
          %s2663 = scalar_lea.vmem [#allocation11], %s2662
          %2665 = dma.done %s2660, 128
        $region84: #{tpu_custom_call.1} parent=79 // pred_fallthru
          _
        // Predicated region
        $region85: #{tpu_custom_call.1} parent=79 // pred_check
          %p2666 = pneg %p206
        $region86: #{tpu_custom_call.1} parent=79 // pred_check_branch
          %2668 = sbr.rel (%p2666) target = $region88
        $region87: #{tpu_custom_call.1} parent=79 // pred_region
          %s2669 = sand.u32 %s37, 1
          %s2670 = scalar_lea.sflag [#allocation13], %s2669
          %s2671 = sand.u32 %s191, 1
          %s2672 = smul.addr %s2671, 8
          %s2673 = scalar_lea.vmem [#allocation12], %s2672
          %2675 = dma.done %s2670, 128
        $region88: #{tpu_custom_call.1} parent=79 // pred_fallthru
          _
        // Predicated region
        $region89: #{tpu_custom_call.1} parent=79 // pred_check
          %p2676 = pneg %p232
        $region90: #{tpu_custom_call.1} parent=79 // pred_check_branch
          %2678 = sbr.rel (%p2676) target = $region92
        $region91: #{tpu_custom_call.1} parent=79 // pred_region
          %s2679 = sand.u32 %s37, 1
          %s2680 = scalar_lea.sflag [#allocation13], %s2679
          %s2681 = sand.u32 %s217, 1
          %s2682 = smul.addr %s2681, 8
          %s2683 = scalar_lea.vmem [#allocation14], %s2682
          %2685 = dma.done %s2680, 128
        $region92: #{tpu_custom_call.1} parent=79 // pred_fallthru
          _
        // Predicated region
        $region93: #{tpu_custom_call.1} parent=79 // pred_check
          %p2686 = pneg %p258
        $region94: #{tpu_custom_call.1} parent=79 // pred_check_branch
          %2688 = sbr.rel (%p2686) target = $region96
        $region95: #{tpu_custom_call.1} parent=79 // pred_region
          %s2689 = sand.u32 %s243, 1
          %s2690 = scalar_lea.sflag [#allocation16], %s2689
          %s2691 = sand.u32 %s243, 1
          %s2692 = smul.addr %s2691, 8
          %s2693 = scalar_lea.vmem [#allocation15], %s2692
          %2695 = dma.done %s2690, 128
        $region96: #{tpu_custom_call.1} parent=79 // pred_fallthru
          _
      $region80: #{tpu_custom_call.1} parent=5 // pred_fallthru
        _
    $region6: #{tpu_custom_call.1} parent=1 // loop_footer
      %s35 = sadd.s32 1, %s31
    $region7: #{tpu_custom_call.1} parent=1 // loop_footer_branch
      %30 = sbr.rel target = $region3
    $region8: #{tpu_custom_call.1} parent=1 // loop_exit
      _
    %2696 = vsyncpa [#allocation3], 1
    %s2697 = scalar_lea.sflag [#allocation3], 1
    %2698 = vsyncpa %s2697, 1
    %2699 = vsyncpa [#allocation6], 1
    %s2700 = scalar_lea.sflag [#allocation6], 1
    %2701 = vsyncpa %s2700, 1
    %2702 = vsyncpa [#allocation9], 1
    %2703 = vsyncpa [#allocation4], 1
    %s2704 = scalar_lea.sflag [#allocation4], 1
    %2705 = vsyncpa %s2704, 1
    %2706 = vsyncpa [#allocation13], 1
    %s2707 = scalar_lea.sflag [#allocation13], 1
    %2708 = vsyncpa %s2707, 1
    %2709 = vsyncpa [#allocation16], 1
    %s2710 = scalar_lea.sflag [#allocation16], 1
    %2711 = vsyncpa %s2710, 1

</llo_original>
